<compile_context>
chip_gen: v6e
topology: v6e:2x2x1
jax: 0.10.0
libtpu: 0.0.40
codegen_flags: <defaults>
</compile_context>

<pallas_src>
import functools
import numpy as np
import jax
import jax.numpy as jnp
from jax.experimental import pallas as pl
from jax.experimental.pallas import tpu as pltpu

KSIZE = 5
PAD = KSIZE // 2


def _build_line_masks(H, W):
    """Factorized 0/1 'same'-padding masks in flat [H*W]:
       rows 0..K-1   : row masks  rmask(dh),  dh = -PAD..PAD   (valid iff 0 <= r+dh < H)
       rows K..2K-1  : col masks  cmask(dw),  dw = -PAD..PAD   (valid iff 0 <= c+dw < W)
    """
    masks = np.zeros((2 * KSIZE, H * W), np.float32)
    for i, d in enumerate(range(-PAD, PAD + 1)):
        rm = np.zeros((H, W), np.float32)
        rm[max(0, -d):min(H, H - d), :] = 1.0
        masks[i] = rm.reshape(-1)
        cm = np.zeros((H, W), np.float32)
        cm[:, max(0, -d):min(W, W - d)] = 1.0
        masks[KSIZE + i] = cm.reshape(-1)
    return masks


def ie_kernel(W, img_ref, ill_ref, w1_ref, b1_ref, wdw_ref, bdw_ref,
              wmap_ref, bmap_ref, mask_ref, fea_ref, map_ref):
    bn = img_ref.shape[0]          # batch elements handled in this grid step
    HW = img_ref.shape[2]          # flattened spatial, on the lane axis

    w1 = w1_ref[...]               # [Ch, 4]
    w1_rgb = w1[:, 0:3]            # [Ch, 3]
    w1_ill = w1[:, 3:4]            # [Ch, 1]
    b1 = b1_ref[...]               # [Ch, 1]
    bdw = bdw_ref[...]             # [Ch, 1]
    wmap = wmap_ref[...]           # [Cout, Ch]
    bmap = bmap_ref[...]           # [Cout, 1]
    wdw = wdw_ref[...]             # [Ch, 25]
    masks = mask_ref[...]          # [2*K, HW] 0/1 float32

    # Hoisted weight / mask slices (no per-tap re-slicing of refs inside the MAC loop).
    wks = [[wdw[:, (kh * KSIZE + kw):(kh * KSIZE + kw) + 1] for kw in range(KSIZE)]
           for kh in range(KSIZE)]                              # each [Ch, 1]
    rmask = [masks[kh:kh + 1, :] for kh in range(KSIZE)]        # each [1, HW]
    cmask = [masks[KSIZE + kw:KSIZE + kw + 1, :] for kw in range(KSIZE)]

    for b in range(bn):
        img_b = img_ref[b]         # [3, HW]
        ill_b = ill_ref[b]         # [1, HW]

        # ---- conv1: 1x1 conv == channel matmul, lane-dense [Ch, HW] ----
        h = jnp.dot(w1_rgb, img_b, preferred_element_type=jnp.float32)
        h = h + w1_ill * ill_b + b1                              # [Ch, HW]

        # ---- conv_fea: depthwise 5x5 ('same' zero padding), factorized rolls + masks ----
        # Horizontal (column) shifts, column-masked once per dw.
        g = []
        for kw in range(KSIZE):
            dw = kw - PAD
            if dw == 0:
                g.append(h)
            else:
                g.append(pltpu.roll(h, (-dw) % HW, 1) * cmask[kw])   # XLU + 1 VPU mul

        acc = None
        for kh in range(KSIZE):
            dh = kh - PAD
            inner = g[0] * wks[kh][0]
            for kw in range(1, KSIZE):
                inner = inner + g[kw] * wks[kh][kw]              # per-channel weight MACs
            if dh == 0:
                term = inner
            else:
                # Whole-row roll preserves the column, so the pre-applied cmask is
                # still aligned with the output column; rmask applies at output rows.
                term = pltpu.roll(inner, (-(dh * W)) % HW, 1) * rmask[kh]
            acc = term if acc is None else acc + term
        fea = acc + bdw                                          # [Ch, HW]

        # ---- conv_map: 1x1 conv == channel matmul ----
        m = jnp.dot(wmap, fea, preferred_element_type=jnp.float32) + bmap   # [Cout, HW]

        # lane-dense full-width stores (no masked partial stores)
        fea_ref[b] = fea.astype(fea_ref.dtype)
        map_ref[b] = m.astype(map_ref.dtype)


def illumination_estimator(img, img_illumination, params):
    """img: [N,3,H,W], img_illumination: [N,1,H,W] (NCHW, like PyTorch)."""
    N, Crgb, H, W = img.shape
    HW = H * W
    Ch = params["w1"].shape[0]
    Cin = params["w1"].shape[1]
    Cout = params["wmap"].shape[0]

    # NCHW with flattened spatial: pure reshapes, no transposes, no concat.
    img_f = img.reshape(N, Crgb, HW).astype(jnp.float32)
    ill_f = img_illumination.reshape(N, 1, HW).astype(jnp.float32)

    w1 = params["w1"].astype(jnp.float32)                               # [Ch, 4]
    b1 = params["b1"].reshape(Ch, 1).astype(jnp.float32)
    wdw = params["wdw"].reshape(Ch, KSIZE * KSIZE).astype(jnp.float32)  # [Ch, 25]
    bdw = params["bdw"].reshape(Ch, 1).astype(jnp.float32)
    wmap = params["wmap"].astype(jnp.float32)                           # [Cout, Ch]
    bmap = params["bmap"].reshape(Cout, 1).astype(jnp.float32)
    masks = jnp.asarray(_build_line_masks(H, W))                        # [2*K, HW]

    # Grid coarsening: at most 2 batch-block steps.  >=2 "parallel" steps keep both
    # v7x TensorCores busy; few fat steps amortize per-step overhead on 1-TC v5e/v6e.
    bn = N // 2 if (N >= 2 and N % 2 == 0) else 1
    steps = N // bn

    fea, imap = pl.pallas_call(
        functools.partial(ie_kernel, W),
        out_shape=(
            jax.ShapeDtypeStruct((N, Ch, HW), jnp.float32),
            jax.ShapeDtypeStruct((N, Cout, HW), jnp.float32),
        ),
        grid_spec=pltpu.PrefetchScalarGridSpec(
            num_scalar_prefetch=0,
            grid=(steps,),
            in_specs=[
                pl.BlockSpec((bn, Crgb, HW), lambda n: (n, 0, 0)),
                pl.BlockSpec((bn, 1, HW), lambda n: (n, 0, 0)),
                pl.BlockSpec((Ch, Cin), lambda n: (0, 0)),
                pl.BlockSpec((Ch, 1), lambda n: (0, 0)),
                pl.BlockSpec((Ch, KSIZE * KSIZE), lambda n: (0, 0)),
                pl.BlockSpec((Ch, 1), lambda n: (0, 0)),
                pl.BlockSpec((Cout, Ch), lambda n: (0, 0)),
                pl.BlockSpec((Cout, 1), lambda n: (0, 0)),
                pl.BlockSpec((2 * KSIZE, HW), lambda n: (0, 0)),
            ],
            out_specs=[
                pl.BlockSpec((bn, Ch, HW), lambda n: (n, 0, 0)),
                pl.BlockSpec((bn, Cout, HW), lambda n: (n, 0, 0)),
            ],
        ),
        compiler_params=pltpu.CompilerParams(
            dimension_semantics=("parallel",)),
    )(img_f, ill_f, w1, b1, wdw, bdw, wmap, bmap, masks)

    illu_fea = fea.reshape(N, Ch, H, W)      # NCHW, free reshape
    illu_map = imap.reshape(N, Cout, H, W)
    return illu_fea, illu_map


def make_params(key, feature_in=4, hidden=32, feature_out=3):
    ks = jax.random.split(key, 6)
    # PyTorch layouts: conv1.weight [hidden, feature_in, 1, 1]   -> [hidden, feature_in]
    #                  conv_fea.weight [hidden, 1, 5, 5]         -> [hidden, 5, 5]
    #                  conv_map.weight [feature_out, hidden, 1,1]-> [feature_out, hidden]
    return {
        "w1":   0.1 * jax.random.normal(ks[0], (hidden, feature_in), jnp.float32),
        "b1":   0.1 * jax.random.normal(ks[1], (hidden,), jnp.float32),
        "wdw":  0.1 * jax.random.normal(ks[2], (hidden, KSIZE, KSIZE), jnp.float32),
        "bdw":  0.1 * jax.random.normal(ks[3], (hidden,), jnp.float32),
        "wmap": 0.1 * jax.random.normal(ks[4], (feature_out, hidden), jnp.float32),
        "bmap": 0.1 * jax.random.normal(ks[5], (feature_out,), jnp.float32),
    }


def ref_forward(img, img_illumination, params):
    """Pure-JAX reference (matches the PyTorch forward with active=None)."""
    x = jnp.concatenate([img, img_illumination], axis=1)        # NCHW
    hidden = params["w1"].shape[0]
    dn = ("NCHW", "OIHW", "NCHW")
    w1 = params["w1"][:, :, None, None]
    h = jax.lax.conv_general_dilated(x, w1, (1, 1), "VALID", dimension_numbers=dn)
    h = h + params["b1"][None, :, None, None]
    wdw = params["wdw"][:, None, :, :]
    fea = jax.lax.conv_general_dilated(h, wdw, (1, 1), ((PAD, PAD), (PAD, PAD)),
                                       dimension_numbers=dn,
                                       feature_group_count=hidden)
    fea = fea + params["bdw"][None, :, None, None]
    wmap = params["wmap"][:, :, None, None]
    m = jax.lax.conv_general_dilated(fea, wmap, (1, 1), "VALID", dimension_numbers=dn)
    m = m + params["bmap"][None, :, None, None]
    return fea, m


if __name__ == "__main__":
    key = jax.random.PRNGKey(0)
    k_img, k_illu, k_par = jax.random.split(key, 3)

    N, H, W = 2, 16, 16
    hidden, feature_in, feature_out = 32, 4, 3

    img = jax.random.uniform(k_img, (N, 3, H, W), jnp.float32)                # low-light RGB
    img_illumination = jax.random.uniform(k_illu, (N, 1, H, W), jnp.float32)  # brightness map
    params = make_params(k_par, feature_in, hidden, feature_out)

    illu_fea, illu_map = illumination_estimator(img, img_illumination, params)
    jax.block_until_ready((illu_fea, illu_map))

    ref_fea, ref_map = ref_forward(img, img_illumination, params)
    np.testing.assert_allclose(np.asarray(illu_fea), np.asarray(ref_fea),
                               rtol=1e-3, atol=1e-3)
    np.testing.assert_allclose(np.asarray(illu_map), np.asarray(ref_map),
                               rtol=1e-3, atol=1e-3)

    assert illu_fea.shape == (N, hidden, H, W)
    assert illu_map.shape == (N, feature_out, H, W)
    print("KERNEL_OK")
</pallas_src>

<mosaic_0001>
module attributes {stable_mosaic.version = 11 : i64} {
  func.func @ie_kernel(%arg0: i32, %arg1: memref<1x3x256xf32, #tpu.memory_space<vmem>>, %arg2: memref<1x1x256xf32, #tpu.memory_space<vmem>>, %arg3: memref<32x4xf32, #tpu.memory_space<vmem>>, %arg4: memref<32x1xf32, #tpu.memory_space<vmem>>, %arg5: memref<32x25xf32, #tpu.memory_space<vmem>>, %arg6: memref<32x1xf32, #tpu.memory_space<vmem>>, %arg7: memref<3x32xf32, #tpu.memory_space<vmem>>, %arg8: memref<3x1xf32, #tpu.memory_space<vmem>>, %arg9: memref<10x256xf32, #tpu.memory_space<vmem>>, %arg10: memref<1x32x256xf32, #tpu.memory_space<vmem>>, %arg11: memref<1x3x256xf32, #tpu.memory_space<vmem>>) attributes {dimension_semantics = [#tpu.dimension_semantics<parallel>], iteration_bounds = array<i64: 2>, scalar_prefetch = 0 : i64, scratch_operands = 0 : i64, tpu.core_type = #tpu.core_type<tc>, window_params = [{transform_indices = @transform_0, window_bounds = array<i64: 1, 3, 256>}, {transform_indices = @transform_1, window_bounds = array<i64: 1, 1, 256>}, {pipeline_mode = #tpu.pipeline_mode<synchronous>, transform_indices = @transform_2, window_bounds = array<i64: 32, 4>}, {pipeline_mode = #tpu.pipeline_mode<synchronous>, transform_indices = @transform_3, window_bounds = array<i64: 32, 1>}, {pipeline_mode = #tpu.pipeline_mode<synchronous>, transform_indices = @transform_4, window_bounds = array<i64: 32, 25>}, {pipeline_mode = #tpu.pipeline_mode<synchronous>, transform_indices = @transform_5, window_bounds = array<i64: 32, 1>}, {pipeline_mode = #tpu.pipeline_mode<synchronous>, transform_indices = @transform_6, window_bounds = array<i64: 3, 32>}, {pipeline_mode = #tpu.pipeline_mode<synchronous>, transform_indices = @transform_7, window_bounds = array<i64: 3, 1>}, {pipeline_mode = #tpu.pipeline_mode<synchronous>, transform_indices = @transform_8, window_bounds = array<i64: 10, 256>}, {transform_indices = @transform_9, window_bounds = array<i64: 1, 32, 256>}, {transform_indices = @transform_10, window_bounds = array<i64: 1, 3, 256>}]} {
    %c0 = arith.constant 0 : index
    %c0_0 = arith.constant 0 : index
    %0 = vector.load %arg3[%c0, %c0_0] : memref<32x4xf32, #tpu.memory_space<vmem>>, vector<32x4xf32>
    %1 = vector.extract_strided_slice %0 {offsets = [0, 0], sizes = [32, 3], strides = [1, 1]} : vector<32x4xf32> to vector<32x3xf32>
    %2 = vector.extract_strided_slice %0 {offsets = [0, 3], sizes = [32, 1], strides = [1, 1]} : vector<32x4xf32> to vector<32x1xf32>
    %c0_1 = arith.constant 0 : index
    %c0_2 = arith.constant 0 : index
    %3 = vector.load %arg4[%c0_1, %c0_2] : memref<32x1xf32, #tpu.memory_space<vmem>>, vector<32x1xf32>
    %c0_3 = arith.constant 0 : index
    %c0_4 = arith.constant 0 : index
    %4 = vector.load %arg6[%c0_3, %c0_4] : memref<32x1xf32, #tpu.memory_space<vmem>>, vector<32x1xf32>
    %c0_5 = arith.constant 0 : index
    %c0_6 = arith.constant 0 : index
    %5 = vector.load %arg7[%c0_5, %c0_6] : memref<3x32xf32, #tpu.memory_space<vmem>>, vector<3x32xf32>
    %c0_7 = arith.constant 0 : index
    %c0_8 = arith.constant 0 : index
    %6 = vector.load %arg8[%c0_7, %c0_8] : memref<3x1xf32, #tpu.memory_space<vmem>>, vector<3x1xf32>
    %c0_9 = arith.constant 0 : index
    %c0_10 = arith.constant 0 : index
    %7 = vector.load %arg5[%c0_9, %c0_10] : memref<32x25xf32, #tpu.memory_space<vmem>>, vector<32x25xf32>
    %c0_11 = arith.constant 0 : index
    %c0_12 = arith.constant 0 : index
    %8 = vector.load %arg9[%c0_11, %c0_12] : memref<10x256xf32, #tpu.memory_space<vmem>>, vector<10x256xf32>
    %9 = vector.extract_strided_slice %7 {offsets = [0, 0], sizes = [32, 1], strides = [1, 1]} : vector<32x25xf32> to vector<32x1xf32>
    %10 = vector.extract_strided_slice %7 {offsets = [0, 1], sizes = [32, 1], strides = [1, 1]} : vector<32x25xf32> to vector<32x1xf32>
    %11 = vector.extract_strided_slice %7 {offsets = [0, 2], sizes = [32, 1], strides = [1, 1]} : vector<32x25xf32> to vector<32x1xf32>
    %12 = vector.extract_strided_slice %7 {offsets = [0, 3], sizes = [32, 1], strides = [1, 1]} : vector<32x25xf32> to vector<32x1xf32>
    %13 = vector.extract_strided_slice %7 {offsets = [0, 4], sizes = [32, 1], strides = [1, 1]} : vector<32x25xf32> to vector<32x1xf32>
    %14 = vector.extract_strided_slice %7 {offsets = [0, 5], sizes = [32, 1], strides = [1, 1]} : vector<32x25xf32> to vector<32x1xf32>
    %15 = vector.extract_strided_slice %7 {offsets = [0, 6], sizes = [32, 1], strides = [1, 1]} : vector<32x25xf32> to vector<32x1xf32>
    %16 = vector.extract_strided_slice %7 {offsets = [0, 7], sizes = [32, 1], strides = [1, 1]} : vector<32x25xf32> to vector<32x1xf32>
    %17 = vector.extract_strided_slice %7 {offsets = [0, 8], sizes = [32, 1], strides = [1, 1]} : vector<32x25xf32> to vector<32x1xf32>
    %18 = vector.extract_strided_slice %7 {offsets = [0, 9], sizes = [32, 1], strides = [1, 1]} : vector<32x25xf32> to vector<32x1xf32>
    %19 = vector.extract_strided_slice %7 {offsets = [0, 10], sizes = [32, 1], strides = [1, 1]} : vector<32x25xf32> to vector<32x1xf32>
    %20 = vector.extract_strided_slice %7 {offsets = [0, 11], sizes = [32, 1], strides = [1, 1]} : vector<32x25xf32> to vector<32x1xf32>
    %21 = vector.extract_strided_slice %7 {offsets = [0, 12], sizes = [32, 1], strides = [1, 1]} : vector<32x25xf32> to vector<32x1xf32>
    %22 = vector.extract_strided_slice %7 {offsets = [0, 13], sizes = [32, 1], strides = [1, 1]} : vector<32x25xf32> to vector<32x1xf32>
    %23 = vector.extract_strided_slice %7 {offsets = [0, 14], sizes = [32, 1], strides = [1, 1]} : vector<32x25xf32> to vector<32x1xf32>
    %24 = vector.extract_strided_slice %7 {offsets = [0, 15], sizes = [32, 1], strides = [1, 1]} : vector<32x25xf32> to vector<32x1xf32>
    %25 = vector.extract_strided_slice %7 {offsets = [0, 16], sizes = [32, 1], strides = [1, 1]} : vector<32x25xf32> to vector<32x1xf32>
    %26 = vector.extract_strided_slice %7 {offsets = [0, 17], sizes = [32, 1], strides = [1, 1]} : vector<32x25xf32> to vector<32x1xf32>
    %27 = vector.extract_strided_slice %7 {offsets = [0, 18], sizes = [32, 1], strides = [1, 1]} : vector<32x25xf32> to vector<32x1xf32>
    %28 = vector.extract_strided_slice %7 {offsets = [0, 19], sizes = [32, 1], strides = [1, 1]} : vector<32x25xf32> to vector<32x1xf32>
    %29 = vector.extract_strided_slice %7 {offsets = [0, 20], sizes = [32, 1], strides = [1, 1]} : vector<32x25xf32> to vector<32x1xf32>
    %30 = vector.extract_strided_slice %7 {offsets = [0, 21], sizes = [32, 1], strides = [1, 1]} : vector<32x25xf32> to vector<32x1xf32>
    %31 = vector.extract_strided_slice %7 {offsets = [0, 22], sizes = [32, 1], strides = [1, 1]} : vector<32x25xf32> to vector<32x1xf32>
    %32 = vector.extract_strided_slice %7 {offsets = [0, 23], sizes = [32, 1], strides = [1, 1]} : vector<32x25xf32> to vector<32x1xf32>
    %33 = vector.extract_strided_slice %7 {offsets = [0, 24], sizes = [32, 1], strides = [1, 1]} : vector<32x25xf32> to vector<32x1xf32>
    %34 = vector.extract_strided_slice %8 {offsets = [0, 0], sizes = [1, 256], strides = [1, 1]} : vector<10x256xf32> to vector<1x256xf32>
    %35 = vector.extract_strided_slice %8 {offsets = [1, 0], sizes = [1, 256], strides = [1, 1]} : vector<10x256xf32> to vector<1x256xf32>
    %36 = vector.extract_strided_slice %8 {offsets = [3, 0], sizes = [1, 256], strides = [1, 1]} : vector<10x256xf32> to vector<1x256xf32>
    %37 = vector.extract_strided_slice %8 {offsets = [4, 0], sizes = [1, 256], strides = [1, 1]} : vector<10x256xf32> to vector<1x256xf32>
    %38 = vector.extract_strided_slice %8 {offsets = [5, 0], sizes = [1, 256], strides = [1, 1]} : vector<10x256xf32> to vector<1x256xf32>
    %39 = vector.extract_strided_slice %8 {offsets = [6, 0], sizes = [1, 256], strides = [1, 1]} : vector<10x256xf32> to vector<1x256xf32>
    %40 = vector.extract_strided_slice %8 {offsets = [8, 0], sizes = [1, 256], strides = [1, 1]} : vector<10x256xf32> to vector<1x256xf32>
    %41 = vector.extract_strided_slice %8 {offsets = [9, 0], sizes = [1, 256], strides = [1, 1]} : vector<10x256xf32> to vector<1x256xf32>
    %c0_13 = arith.constant 0 : index
    %c0_14 = arith.constant 0 : index
    %c0_15 = arith.constant 0 : index
    %42 = vector.load %arg1[%c0_13, %c0_14, %c0_15] : memref<1x3x256xf32, #tpu.memory_space<vmem>>, vector<1x3x256xf32>
    %43 = vector.shape_cast %42 : vector<1x3x256xf32> to vector<3x256xf32>
    %c0_16 = arith.constant 0 : index
    %c0_17 = arith.constant 0 : index
    %c0_18 = arith.constant 0 : index
    %44 = vector.load %arg2[%c0_16, %c0_17, %c0_18] : memref<1x1x256xf32, #tpu.memory_space<vmem>>, vector<1x1x256xf32>
    %45 = vector.shape_cast %44 : vector<1x1x256xf32> to vector<1x256xf32>
    %cst = arith.constant dense<0.000000e+00> : vector<32x256xf32>
    %46 = tpu.matmul %1, %43, %cst {dimension_numbers = #tpu.dot_dimension_numbers<[1], [0], [0], [1], [0, 0, 1, 1], [], []>} : vector<32x3xf32>, vector<3x256xf32>, vector<32x256xf32> -> vector<32x256xf32>
    %47 = vector.broadcast %2 : vector<32x1xf32> to vector<32x256xf32>
    %48 = vector.broadcast %45 : vector<1x256xf32> to vector<32x256xf32>
    %49 = arith.mulf %47, %48 : vector<32x256xf32>
    %50 = arith.addf %46, %49 : vector<32x256xf32>
    %51 = vector.broadcast %3 : vector<32x1xf32> to vector<32x256xf32>
    %52 = arith.addf %50, %51 : vector<32x256xf32>
    %c2_i32 = arith.constant 2 : i32
    %53 = tpu.dynamic_rotate %52 by %c2_i32 dim 1 : vector<32x256xf32>, i32 -> vector<32x256xf32>
    %54 = vector.broadcast %38 : vector<1x256xf32> to vector<32x256xf32>
    %55 = arith.mulf %53, %54 : vector<32x256xf32>
    %c1_i32 = arith.constant 1 : i32
    %56 = tpu.dynamic_rotate %52 by %c1_i32 dim 1 : vector<32x256xf32>, i32 -> vector<32x256xf32>
    %57 = vector.broadcast %39 : vector<1x256xf32> to vector<32x256xf32>
    %58 = arith.mulf %56, %57 : vector<32x256xf32>
    %c255_i32 = arith.constant 255 : i32
    %59 = tpu.dynamic_rotate %52 by %c255_i32 dim 1 : vector<32x256xf32>, i32 -> vector<32x256xf32>
    %60 = vector.broadcast %40 : vector<1x256xf32> to vector<32x256xf32>
    %61 = arith.mulf %59, %60 : vector<32x256xf32>
    %c254_i32 = arith.constant 254 : i32
    %62 = tpu.dynamic_rotate %52 by %c254_i32 dim 1 : vector<32x256xf32>, i32 -> vector<32x256xf32>
    %63 = vector.broadcast %41 : vector<1x256xf32> to vector<32x256xf32>
    %64 = arith.mulf %62, %63 : vector<32x256xf32>
    %65 = vector.broadcast %9 : vector<32x1xf32> to vector<32x256xf32>
    %66 = arith.mulf %55, %65 : vector<32x256xf32>
    %67 = vector.broadcast %10 : vector<32x1xf32> to vector<32x256xf32>
    %68 = arith.mulf %58, %67 : vector<32x256xf32>
    %69 = arith.addf %66, %68 : vector<32x256xf32>
    %70 = vector.broadcast %11 : vector<32x1xf32> to vector<32x256xf32>
    %71 = arith.mulf %52, %70 : vector<32x256xf32>
    %72 = arith.addf %69, %71 : vector<32x256xf32>
    %73 = vector.broadcast %12 : vector<32x1xf32> to vector<32x256xf32>
    %74 = arith.mulf %61, %73 : vector<32x256xf32>
    %75 = arith.addf %72, %74 : vector<32x256xf32>
    %76 = vector.broadcast %13 : vector<32x1xf32> to vector<32x256xf32>
    %77 = arith.mulf %64, %76 : vector<32x256xf32>
    %78 = arith.addf %75, %77 : vector<32x256xf32>
    %c32_i32 = arith.constant 32 : i32
    %79 = tpu.dynamic_rotate %78 by %c32_i32 dim 1 : vector<32x256xf32>, i32 -> vector<32x256xf32>
    %80 = vector.broadcast %34 : vector<1x256xf32> to vector<32x256xf32>
    %81 = arith.mulf %79, %80 : vector<32x256xf32>
    %82 = vector.broadcast %14 : vector<32x1xf32> to vector<32x256xf32>
    %83 = arith.mulf %55, %82 : vector<32x256xf32>
    %84 = vector.broadcast %15 : vector<32x1xf32> to vector<32x256xf32>
    %85 = arith.mulf %58, %84 : vector<32x256xf32>
    %86 = arith.addf %83, %85 : vector<32x256xf32>
    %87 = vector.broadcast %16 : vector<32x1xf32> to vector<32x256xf32>
    %88 = arith.mulf %52, %87 : vector<32x256xf32>
    %89 = arith.addf %86, %88 : vector<32x256xf32>
    %90 = vector.broadcast %17 : vector<32x1xf32> to vector<32x256xf32>
    %91 = arith.mulf %61, %90 : vector<32x256xf32>
    %92 = arith.addf %89, %91 : vector<32x256xf32>
    %93 = vector.broadcast %18 : vector<32x1xf32> to vector<32x256xf32>
    %94 = arith.mulf %64, %93 : vector<32x256xf32>
    %95 = arith.addf %92, %94 : vector<32x256xf32>
    %c16_i32 = arith.constant 16 : i32
    %96 = tpu.dynamic_rotate %95 by %c16_i32 dim 1 : vector<32x256xf32>, i32 -> vector<32x256xf32>
    %97 = vector.broadcast %35 : vector<1x256xf32> to vector<32x256xf32>
    %98 = arith.mulf %96, %97 : vector<32x256xf32>
    %99 = arith.addf %81, %98 : vector<32x256xf32>
    %100 = vector.broadcast %19 : vector<32x1xf32> to vector<32x256xf32>
    %101 = arith.mulf %55, %100 : vector<32x256xf32>
    %102 = vector.broadcast %20 : vector<32x1xf32> to vector<32x256xf32>
    %103 = arith.mulf %58, %102 : vector<32x256xf32>
    %104 = arith.addf %101, %103 : vector<32x256xf32>
    %105 = vector.broadcast %21 : vector<32x1xf32> to vector<32x256xf32>
    %106 = arith.mulf %52, %105 : vector<32x256xf32>
    %107 = arith.addf %104, %106 : vector<32x256xf32>
    %108 = vector.broadcast %22 : vector<32x1xf32> to vector<32x256xf32>
    %109 = arith.mulf %61, %108 : vector<32x256xf32>
    %110 = arith.addf %107, %109 : vector<32x256xf32>
    %111 = vector.broadcast %23 : vector<32x1xf32> to vector<32x256xf32>
    %112 = arith.mulf %64, %111 : vector<32x256xf32>
    %113 = arith.addf %110, %112 : vector<32x256xf32>
    %114 = arith.addf %99, %113 : vector<32x256xf32>
    %115 = vector.broadcast %24 : vector<32x1xf32> to vector<32x256xf32>
    %116 = arith.mulf %55, %115 : vector<32x256xf32>
    %117 = vector.broadcast %25 : vector<32x1xf32> to vector<32x256xf32>
    %118 = arith.mulf %58, %117 : vector<32x256xf32>
    %119 = arith.addf %116, %118 : vector<32x256xf32>
    %120 = vector.broadcast %26 : vector<32x1xf32> to vector<32x256xf32>
    %121 = arith.mulf %52, %120 : vector<32x256xf32>
    %122 = arith.addf %119, %121 : vector<32x256xf32>
    %123 = vector.broadcast %27 : vector<32x1xf32> to vector<32x256xf32>
    %124 = arith.mulf %61, %123 : vector<32x256xf32>
    %125 = arith.addf %122, %124 : vector<32x256xf32>
    %126 = vector.broadcast %28 : vector<32x1xf32> to vector<32x256xf32>
    %127 = arith.mulf %64, %126 : vector<32x256xf32>
    %128 = arith.addf %125, %127 : vector<32x256xf32>
    %c240_i32 = arith.constant 240 : i32
    %129 = tpu.dynamic_rotate %128 by %c240_i32 dim 1 : vector<32x256xf32>, i32 -> vector<32x256xf32>
    %130 = vector.broadcast %36 : vector<1x256xf32> to vector<32x256xf32>
    %131 = arith.mulf %129, %130 : vector<32x256xf32>
    %132 = arith.addf %114, %131 : vector<32x256xf32>
    %133 = vector.broadcast %29 : vector<32x1xf32> to vector<32x256xf32>
    %134 = arith.mulf %55, %133 : vector<32x256xf32>
    %135 = vector.broadcast %30 : vector<32x1xf32> to vector<32x256xf32>
    %136 = arith.mulf %58, %135 : vector<32x256xf32>
    %137 = arith.addf %134, %136 : vector<32x256xf32>
    %138 = vector.broadcast %31 : vector<32x1xf32> to vector<32x256xf32>
    %139 = arith.mulf %52, %138 : vector<32x256xf32>
    %140 = arith.addf %137, %139 : vector<32x256xf32>
    %141 = vector.broadcast %32 : vector<32x1xf32> to vector<32x256xf32>
    %142 = arith.mulf %61, %141 : vector<32x256xf32>
    %143 = arith.addf %140, %142 : vector<32x256xf32>
    %144 = vector.broadcast %33 : vector<32x1xf32> to vector<32x256xf32>
    %145 = arith.mulf %64, %144 : vector<32x256xf32>
    %146 = arith.addf %143, %145 : vector<32x256xf32>
    %c224_i32 = arith.constant 224 : i32
    %147 = tpu.dynamic_rotate %146 by %c224_i32 dim 1 : vector<32x256xf32>, i32 -> vector<32x256xf32>
    %148 = vector.broadcast %37 : vector<1x256xf32> to vector<32x256xf32>
    %149 = arith.mulf %147, %148 : vector<32x256xf32>
    %150 = arith.addf %132, %149 : vector<32x256xf32>
    %151 = vector.broadcast %4 : vector<32x1xf32> to vector<32x256xf32>
    %152 = arith.addf %150, %151 : vector<32x256xf32>
    %cst_19 = arith.constant dense<0.000000e+00> : vector<3x256xf32>
    %153 = tpu.matmul %5, %152, %cst_19 {dimension_numbers = #tpu.dot_dimension_numbers<[1], [0], [0], [1], [0, 0, 1, 1], [], []>} : vector<3x32xf32>, vector<32x256xf32>, vector<3x256xf32> -> vector<3x256xf32>
    %154 = vector.broadcast %6 : vector<3x1xf32> to vector<3x256xf32>
    %155 = arith.addf %153, %154 : vector<3x256xf32>
    %c0_20 = arith.constant 0 : index
    %c0_21 = arith.constant 0 : index
    %c0_22 = arith.constant 0 : index
    %156 = vector.load %arg10[%c0_20, %c0_21, %c0_22] : memref<1x32x256xf32, #tpu.memory_space<vmem>>, vector<1x32x256xf32>
    %157 = vector.shape_cast %156 : vector<1x32x256xf32> to vector<32x256xf32>
    %158 = vector.shape_cast %152 : vector<32x256xf32> to vector<1x32x256xf32>
    tpu.vector_store %arg10[%c0_20, %c0_21, %c0_22], %158 {strides = array<i32>} : memref<1x32x256xf32, #tpu.memory_space<vmem>>, vector<1x32x256xf32>,
    %c0_23 = arith.constant 0 : index
    %c0_24 = arith.constant 0 : index
    %c0_25 = arith.constant 0 : index
    %159 = vector.load %arg11[%c0_23, %c0_24, %c0_25] : memref<1x3x256xf32, #tpu.memory_space<vmem>>, vector<1x3x256xf32>
    %160 = vector.shape_cast %159 : vector<1x3x256xf32> to vector<3x256xf32>
    %161 = vector.shape_cast %155 : vector<3x256xf32> to vector<1x3x256xf32>
    tpu.vector_store %arg11[%c0_23, %c0_24, %c0_25], %161 {strides = array<i32>} : memref<1x3x256xf32, #tpu.memory_space<vmem>>, vector<1x3x256xf32>,
    return
  }
  func.func @transform_0(%arg0: i32) -> (i32, i32, i32) {
    %c0_i32 = arith.constant 0 : i32
    %c0_i32_0 = arith.constant 0 : i32
    %c0_i32_1 = arith.constant 0 : i32
    return %arg0, %c0_i32, %c0_i32_0 : i32, i32, i32
  }
  func.func @transform_1(%arg0: i32) -> (i32, i32, i32) {
    %c0_i32 = arith.constant 0 : i32
    %c0_i32_0 = arith.constant 0 : i32
    %c0_i32_1 = arith.constant 0 : i32
    return %arg0, %c0_i32, %c0_i32_0 : i32, i32, i32
  }
  func.func @transform_2(%arg0: i32) -> (i32, i32) {
    %c0_i32 = arith.constant 0 : i32
    %c0_i32_0 = arith.constant 0 : i32
    %c0_i32_1 = arith.constant 0 : i32
    return %c0_i32, %c0_i32_0 : i32, i32
  }
  func.func @transform_3(%arg0: i32) -> (i32, i32) {
    %c0_i32 = arith.constant 0 : i32
    %c0_i32_0 = arith.constant 0 : i32
    %c0_i32_1 = arith.constant 0 : i32
    return %c0_i32, %c0_i32_0 : i32, i32
  }
  func.func @transform_4(%arg0: i32) -> (i32, i32) {
    %c0_i32 = arith.constant 0 : i32
    %c0_i32_0 = arith.constant 0 : i32
    %c0_i32_1 = arith.constant 0 : i32
    return %c0_i32, %c0_i32_0 : i32, i32
  }
  func.func @transform_5(%arg0: i32) -> (i32, i32) {
    %c0_i32 = arith.constant 0 : i32
    %c0_i32_0 = arith.constant 0 : i32
    %c0_i32_1 = arith.constant 0 : i32
    return %c0_i32, %c0_i32_0 : i32, i32
  }
  func.func @transform_6(%arg0: i32) -> (i32, i32) {
    %c0_i32 = arith.constant 0 : i32
    %c0_i32_0 = arith.constant 0 : i32
    %c0_i32_1 = arith.constant 0 : i32
    return %c0_i32, %c0_i32_0 : i32, i32
  }
  func.func @transform_7(%arg0: i32) -> (i32, i32) {
    %c0_i32 = arith.constant 0 : i32
    %c0_i32_0 = arith.constant 0 : i32
    %c0_i32_1 = arith.constant 0 : i32
    return %c0_i32, %c0_i32_0 : i32, i32
  }
  func.func @transform_8(%arg0: i32) -> (i32, i32) {
    %c0_i32 = arith.constant 0 : i32
    %c0_i32_0 = arith.constant 0 : i32
    %c0_i32_1 = arith.constant 0 : i32
    return %c0_i32, %c0_i32_0 : i32, i32
  }
  func.func @transform_9(%arg0: i32) -> (i32, i32, i32) {
    %c0_i32 = arith.constant 0 : i32
    %c0_i32_0 = arith.constant 0 : i32
    %c0_i32_1 = arith.constant 0 : i32
    return %arg0, %c0_i32, %c0_i32_0 : i32, i32, i32
  }
  func.func @transform_10(%arg0: i32) -> (i32, i32, i32) {
    %c0_i32 = arith.constant 0 : i32
    %c0_i32_0 = arith.constant 0 : i32
    %c0_i32_1 = arith.constant 0 : i32
    return %arg0, %c0_i32, %c0_i32_0 : i32, i32, i32
  }
}

</mosaic_0001>

<llo_original>
// kernel: tpu_custom_call.1
$region0: #{tpu_custom_call.1}
  #allocation0 [shape = 'u32[]', space=smem, size = 0x4, offset = 0x4, fixed_abs, tag = 'smem constant byte address 0x4 - core index']
  #allocation1 [shape = 'u32[144,128]{1,0:T(1,128)}', space=vmem, size = 0x12000, scoped, tag = 'internal scratch']
  %s0 = inlined_call_operand.vmem [shape: f32[2,3,256], index: 0, kind: input, shape index: {}]
  %s1 = inlined_call_operand.vmem [shape: f32[2,1,256], index: 1, kind: input, shape index: {}]
  %s2 = inlined_call_operand.vmem [shape: f32[32,4], index: 2, kind: input, shape index: {}]
  %s3 = inlined_call_operand.vmem [shape: f32[32,1], index: 3, kind: input, shape index: {}]
  %s4 = inlined_call_operand.vmem [shape: f32[32,25], index: 4, kind: input, shape index: {}]
  %s5 = inlined_call_operand.vmem [shape: f32[32,1], index: 5, kind: input, shape index: {}]
  %s6 = inlined_call_operand.vmem [shape: f32[3,32], index: 6, kind: input, shape index: {}]
  %s7 = inlined_call_operand.vmem [shape: f32[3,1], index: 7, kind: input, shape index: {}]
  %s8 = inlined_call_operand.vmem [shape: f32[10,256], index: 8, kind: input, shape index: {}]
  %s9 = inlined_call_operand.hbm [shape: f32[2,32,256], index: 9, kind: output, shape index: {0}]
  %s10 = inlined_call_operand.vmem [shape: f32[2,3,256], index: 10, kind: output, shape index: {1}]
  %11 = xla_tuple %s9, %s10
  %s12 = sld [smem:[#allocation0]]
  $region77: #{tpu_custom_call.1} parent=0
    _
  %s14 = ssub.s32 1, %s12
  %s15 = scalar_select 0, %s14, %s12
  $region1: #{tpu_custom_call.1} parent=0
    #allocation2 [shape = 'u8[65536]{0}', space=vmem, size = 0x10000, scoped, tag = 'output window, operand 0']
    #allocation3 [shape = 's32[2]{0}', space=sflag, size = 0x8, scoped, tag = 'scoped memory for tpu_custom_call.1']
    %16 = vsyncpa [#allocation3], 0
    %s17 = scalar_lea.sflag [#allocation3], 1
    %18 = vsyncpa %s17, 0
    loop: start=0, step=1, limit=4
    $region2: #{tpu_custom_call.1} parent=1 // loop_pre_header
      _
    $region3: #{tpu_custom_call.1} parent=1 // loop_header
      %s20 = sphi 0, %s24
      %p21 = scmp.ge.s32.totalorder %s20, 4
      %s30 = sphi 0, %s32
      %s33 = sphi 0, %s30
      %s34 = sphi 0, %s33
      %s50 = sphi 0, %s34
      %s56 = sphi 0, %s58
      %s59 = sphi 0, %s56
      %s60 = sphi 0, %s59
      %s76 = sphi 0, %s60
      %s80 = sphi 0, %s80
      %s82 = sphi 0, %s80
      %s83 = sphi 0, %s82
      %s97 = sphi 0, %s83
      %s101 = sphi 0, %s101
      %s103 = sphi 0, %s101
      %s104 = sphi 0, %s103
      %s118 = sphi 0, %s104
      %s122 = sphi 0, %s122
      %s124 = sphi 0, %s122
      %s125 = sphi 0, %s124
      %s139 = sphi 0, %s125
      %s143 = sphi 0, %s143
      %s145 = sphi 0, %s143
      %s146 = sphi 0, %s145
      %s160 = sphi 0, %s146
      %s164 = sphi 0, %s164
      %s166 = sphi 0, %s164
      %s167 = sphi 0, %s166
      %s181 = sphi 0, %s167
      %s185 = sphi 0, %s185
      %s187 = sphi 0, %s185
      %s188 = sphi 0, %s187
      %s202 = sphi 0, %s188
      %s206 = sphi 0, %s206
      %s208 = sphi 0, %s206
      %s209 = sphi 0, %s208
      %s223 = sphi 0, %s209
      %s229 = sphi 0, %s231
      %s232 = sphi 0, %s229
      %s233 = sphi 0, %s232
      %s249 = sphi 0, %s233
      %s255 = sphi 0, %s257
      %s258 = sphi 0, %s255
      %s259 = sphi 0, %s258
      %s275 = sphi 0, %s259
    $region4: #{tpu_custom_call.1} parent=1 // loop_header_branch
      %23 = sbr.rel (%p21) target = $region8
    $region5: #{tpu_custom_call.1} parent=1 // loop_body
      %s25 = ssub.s32 %s20, 1
      %s26 = ssub.s32 %s20, 2
      %s27 = sadd.s32 %s20, 1
      %s28 = ssub.s32 %s20, %s27
      %p29 = scmp.eq.s32.totalorder %s28, 0
      %s31 = sadd.s32 %s30, 1
      %s32 = scalar_select %p29, %s30, %s31
      %p35 = pneg %p29
      %p36 = scmp.eq.s32.totalorder %s20, 1
      %p37 = por %p35, %p36
      %p38 = scmp.ne.s32.totalorder %s30, %s33
      %p39 = scmp.eq.s32.totalorder %s20, 0
      %p40 = por %p38, %p39
      %p41 = scmp.ne.s32.totalorder %s30, %s33
      %p42 = scmp.eq.s32.totalorder %s25, 1
      %p43 = por %p41, %p42
      %p44 = scmp.ne.s32.totalorder %s33, %s34
      %p45 = scmp.eq.s32.totalorder %s25, 0
      %p46 = por %p44, %p45
      %p47 = scmp.ne.s32.totalorder %s33, %s34
      %p48 = scmp.eq.s32.totalorder %s26, 1
      %p49 = por %p47, %p48
      %p51 = scmp.ne.s32.totalorder %s34, %s50
      %p52 = scmp.eq.s32.totalorder %s26, 0
      %p53 = por %p51, %p52
      %s54 = ssub.s32 %s20, %s27
      %p55 = scmp.eq.s32.totalorder %s54, 0
      %s57 = sadd.s32 %s56, 1
      %s58 = scalar_select %p55, %s56, %s57
      %p61 = pneg %p55
      %p62 = scmp.eq.s32.totalorder %s20, 1
      %p63 = por %p61, %p62
      %p64 = scmp.ne.s32.totalorder %s56, %s59
      %p65 = scmp.eq.s32.totalorder %s20, 0
      %p66 = por %p64, %p65
      %p67 = scmp.ne.s32.totalorder %s56, %s59
      %p68 = scmp.eq.s32.totalorder %s25, 1
      %p69 = por %p67, %p68
      %p70 = scmp.ne.s32.totalorder %s59, %s60
      %p71 = scmp.eq.s32.totalorder %s25, 0
      %p72 = por %p70, %p71
      %p73 = scmp.ne.s32.totalorder %s59, %s60
      %p74 = scmp.eq.s32.totalorder %s26, 1
      %p75 = por %p73, %p74
      %p77 = scmp.ne.s32.totalorder %s60, %s76
      %p78 = scmp.eq.s32.totalorder %s26, 0
      %p79 = por %p77, %p78
      %s81 = sadd.s32 %s80, 1
      %p84 = scmp.eq.s32.totalorder %s20, 1
      %p85 = scmp.ne.s32.totalorder %s80, %s82
      %p86 = scmp.eq.s32.totalorder %s20, 0
      %p87 = por %p85, %p86
      %p88 = scmp.ne.s32.totalorder %s80, %s82
      %p89 = scmp.eq.s32.totalorder %s25, 1
      %p90 = por %p88, %p89
      %p91 = scmp.ne.s32.totalorder %s82, %s83
      %p92 = scmp.eq.s32.totalorder %s25, 0
      %p93 = por %p91, %p92
      %p94 = scmp.ne.s32.totalorder %s82, %s83
      %p95 = scmp.eq.s32.totalorder %s26, 1
      %p96 = por %p94, %p95
      %p98 = scmp.ne.s32.totalorder %s83, %s97
      %p99 = scmp.eq.s32.totalorder %s26, 0
      %p100 = por %p98, %p99
      %s102 = sadd.s32 %s101, 1
      %p105 = scmp.eq.s32.totalorder %s20, 1
      %p106 = scmp.ne.s32.totalorder %s101, %s103
      %p107 = scmp.eq.s32.totalorder %s20, 0
      %p108 = por %p106, %p107
      %p109 = scmp.ne.s32.totalorder %s101, %s103
      %p110 = scmp.eq.s32.totalorder %s25, 1
      %p111 = por %p109, %p110
      %p112 = scmp.ne.s32.totalorder %s103, %s104
      %p113 = scmp.eq.s32.totalorder %s25, 0
      %p114 = por %p112, %p113
      %p115 = scmp.ne.s32.totalorder %s103, %s104
      %p116 = scmp.eq.s32.totalorder %s26, 1
      %p117 = por %p115, %p116
      %p119 = scmp.ne.s32.totalorder %s104, %s118
      %p120 = scmp.eq.s32.totalorder %s26, 0
      %p121 = por %p119, %p120
      %s123 = sadd.s32 %s122, 1
      %p126 = scmp.eq.s32.totalorder %s20, 1
      %p127 = scmp.ne.s32.totalorder %s122, %s124
      %p128 = scmp.eq.s32.totalorder %s20, 0
      %p129 = por %p127, %p128
      %p130 = scmp.ne.s32.totalorder %s122, %s124
      %p131 = scmp.eq.s32.totalorder %s25, 1
      %p132 = por %p130, %p131
      %p133 = scmp.ne.s32.totalorder %s124, %s125
      %p134 = scmp.eq.s32.totalorder %s25, 0
      %p135 = por %p133, %p134
      %p136 = scmp.ne.s32.totalorder %s124, %s125
      %p137 = scmp.eq.s32.totalorder %s26, 1
      %p138 = por %p136, %p137
      %p140 = scmp.ne.s32.totalorder %s125, %s139
      %p141 = scmp.eq.s32.totalorder %s26, 0
      %p142 = por %p140, %p141
      %s144 = sadd.s32 %s143, 1
      %p147 = scmp.eq.s32.totalorder %s20, 1
      %p148 = scmp.ne.s32.totalorder %s143, %s145
      %p149 = scmp.eq.s32.totalorder %s20, 0
      %p150 = por %p148, %p149
      %p151 = scmp.ne.s32.totalorder %s143, %s145
      %p152 = scmp.eq.s32.totalorder %s25, 1
      %p153 = por %p151, %p152
      %p154 = scmp.ne.s32.totalorder %s145, %s146
      %p155 = scmp.eq.s32.totalorder %s25, 0
      %p156 = por %p154, %p155
      %p157 = scmp.ne.s32.totalorder %s145, %s146
      %p158 = scmp.eq.s32.totalorder %s26, 1
      %p159 = por %p157, %p158
      %p161 = scmp.ne.s32.totalorder %s146, %s160
      %p162 = scmp.eq.s32.totalorder %s26, 0
      %p163 = por %p161, %p162
      %s165 = sadd.s32 %s164, 1
      %p168 = scmp.eq.s32.totalorder %s20, 1
      %p169 = scmp.ne.s32.totalorder %s164, %s166
      %p170 = scmp.eq.s32.totalorder %s20, 0
      %p171 = por %p169, %p170
      %p172 = scmp.ne.s32.totalorder %s164, %s166
      %p173 = scmp.eq.s32.totalorder %s25, 1
      %p174 = por %p172, %p173
      %p175 = scmp.ne.s32.totalorder %s166, %s167
      %p176 = scmp.eq.s32.totalorder %s25, 0
      %p177 = por %p175, %p176
      %p178 = scmp.ne.s32.totalorder %s166, %s167
      %p179 = scmp.eq.s32.totalorder %s26, 1
      %p180 = por %p178, %p179
      %p182 = scmp.ne.s32.totalorder %s167, %s181
      %p183 = scmp.eq.s32.totalorder %s26, 0
      %p184 = por %p182, %p183
      %s186 = sadd.s32 %s185, 1
      %p189 = scmp.eq.s32.totalorder %s20, 1
      %p190 = scmp.ne.s32.totalorder %s185, %s187
      %p191 = scmp.eq.s32.totalorder %s20, 0
      %p192 = por %p190, %p191
      %p193 = scmp.ne.s32.totalorder %s185, %s187
      %p194 = scmp.eq.s32.totalorder %s25, 1
      %p195 = por %p193, %p194
      %p196 = scmp.ne.s32.totalorder %s187, %s188
      %p197 = scmp.eq.s32.totalorder %s25, 0
      %p198 = por %p196, %p197
      %p199 = scmp.ne.s32.totalorder %s187, %s188
      %p200 = scmp.eq.s32.totalorder %s26, 1
      %p201 = por %p199, %p200
      %p203 = scmp.ne.s32.totalorder %s188, %s202
      %p204 = scmp.eq.s32.totalorder %s26, 0
      %p205 = por %p203, %p204
      %s207 = sadd.s32 %s206, 1
      %p210 = scmp.eq.s32.totalorder %s20, 1
      %p211 = scmp.ne.s32.totalorder %s206, %s208
      %p212 = scmp.eq.s32.totalorder %s20, 0
      %p213 = por %p211, %p212
      %p214 = scmp.ne.s32.totalorder %s206, %s208
      %p215 = scmp.eq.s32.totalorder %s25, 1
      %p216 = por %p214, %p215
      %p217 = scmp.ne.s32.totalorder %s208, %s209
      %p218 = scmp.eq.s32.totalorder %s25, 0
      %p219 = por %p217, %p218
      %p220 = scmp.ne.s32.totalorder %s208, %s209
      %p221 = scmp.eq.s32.totalorder %s26, 1
      %p222 = por %p220, %p221
      %p224 = scmp.ne.s32.totalorder %s209, %s223
      %p225 = scmp.eq.s32.totalorder %s26, 0
      %p226 = por %p224, %p225
      %s227 = ssub.s32 %s20, %s27
      %p228 = scmp.eq.s32.totalorder %s227, 0
      %s230 = sadd.s32 %s229, 1
      %s231 = scalar_select %p228, %s229, %s230
      %p234 = pneg %p228
      %p235 = scmp.eq.s32.totalorder %s20, 1
      %p236 = por %p234, %p235
      %p237 = scmp.ne.s32.totalorder %s229, %s232
      %p238 = scmp.eq.s32.totalorder %s20, 0
      %p239 = por %p237, %p238
      %p240 = scmp.ne.s32.totalorder %s229, %s232
      %p241 = scmp.eq.s32.totalorder %s25, 1
      %p242 = por %p240, %p241
      %p243 = scmp.ne.s32.totalorder %s232, %s233
      %p244 = scmp.eq.s32.totalorder %s25, 0
      %p245 = por %p243, %p244
      %p246 = scmp.ne.s32.totalorder %s232, %s233
      %p247 = scmp.eq.s32.totalorder %s26, 1
      %p248 = por %p246, %p247
      %p250 = scmp.ne.s32.totalorder %s233, %s249
      %p251 = scmp.eq.s32.totalorder %s26, 0
      %p252 = por %p250, %p251
      %s253 = ssub.s32 %s20, %s27
      %p254 = scmp.eq.s32.totalorder %s253, 0
      %s256 = sadd.s32 %s255, 1
      %s257 = scalar_select %p254, %s255, %s256
      %p260 = pneg %p254
      %p261 = scmp.eq.s32.totalorder %s20, 1
      %p262 = por %p260, %p261
      %p263 = scmp.ne.s32.totalorder %s255, %s258
      %p264 = scmp.eq.s32.totalorder %s20, 0
      %p265 = por %p263, %p264
      %p266 = scmp.ne.s32.totalorder %s255, %s258
      %p267 = scmp.eq.s32.totalorder %s25, 1
      %p268 = por %p266, %p267
      %p269 = scmp.ne.s32.totalorder %s258, %s259
      %p270 = scmp.eq.s32.totalorder %s25, 0
      %p271 = por %p269, %p270
      %p272 = scmp.ne.s32.totalorder %s258, %s259
      %p273 = scmp.eq.s32.totalorder %s26, 1
      %p274 = por %p272, %p273
      %p276 = scmp.ne.s32.totalorder %s259, %s275
      %p277 = scmp.eq.s32.totalorder %s26, 0
      %p278 = por %p276, %p277
      %p279 = scmp.le.s32.totalorder 1, %s20
      %p280 = scmp.lt.s32.totalorder %s20, 3
      %p281 = pnand %p279, %p280
      %p282 = pneg %p281
      // Predicated region
      $region9: #{tpu_custom_call.1} parent=5 // pred_check
        _
      $region10: #{tpu_custom_call.1} parent=5 // pred_check_branch
        %284 = sbr.rel (%p281) target = $region12
      $region11: #{tpu_custom_call.1} parent=5 // pred_region
        %s285 = ssub.s32 %s20, 1
        // Predicated region
        $region13: #{tpu_custom_call.1} parent=11 // pred_check
          %p286 = pneg %p93
        $region14: #{tpu_custom_call.1} parent=11 // pred_check_branch
          %288 = sbr.rel (%p286) target = $region16
        $region15: #{tpu_custom_call.1} parent=11 // pred_region
          _
        $region16: #{tpu_custom_call.1} parent=11 // pred_fallthru
          _
        // Predicated region
        $region17: #{tpu_custom_call.1} parent=11 // pred_check
          %p289 = pneg %p114
        $region18: #{tpu_custom_call.1} parent=11 // pred_check_branch
          %291 = sbr.rel (%p289) target = $region20
        $region19: #{tpu_custom_call.1} parent=11 // pred_region
          _
        $region20: #{tpu_custom_call.1} parent=11 // pred_fallthru
          _
        // Predicated region
        $region21: #{tpu_custom_call.1} parent=11 // pred_check
          %p292 = pneg %p135
        $region22: #{tpu_custom_call.1} parent=11 // pred_check_branch
          %294 = sbr.rel (%p292) target = $region24
        $region23: #{tpu_custom_call.1} parent=11 // pred_region
          _
        $region24: #{tpu_custom_call.1} parent=11 // pred_fallthru
          _
        // Predicated region
        $region25: #{tpu_custom_call.1} parent=11 // pred_check
          %p295 = pneg %p156
        $region26: #{tpu_custom_call.1} parent=11 // pred_check_branch
          %297 = sbr.rel (%p295) target = $region28
        $region27: #{tpu_custom_call.1} parent=11 // pred_region
          _
        $region28: #{tpu_custom_call.1} parent=11 // pred_fallthru
          _
        // Predicated region
        $region29: #{tpu_custom_call.1} parent=11 // pred_check
          %p298 = pneg %p177
        $region30: #{tpu_custom_call.1} parent=11 // pred_check_branch
          %300 = sbr.rel (%p298) target = $region32
        $region31: #{tpu_custom_call.1} parent=11 // pred_region
          _
        $region32: #{tpu_custom_call.1} parent=11 // pred_fallthru
          _
        // Predicated region
        $region33: #{tpu_custom_call.1} parent=11 // pred_check
          %p301 = pneg %p198
        $region34: #{tpu_custom_call.1} parent=11 // pred_check_branch
          %303 = sbr.rel (%p301) target = $region36
        $region35: #{tpu_custom_call.1} parent=11 // pred_region
          _
        $region36: #{tpu_custom_call.1} parent=11 // pred_fallthru
          _
        // Predicated region
        $region37: #{tpu_custom_call.1} parent=11 // pred_check
          %p304 = pneg %p219
        $region38: #{tpu_custom_call.1} parent=11 // pred_check_branch
          %306 = sbr.rel (%p304) target = $region40
        $region39: #{tpu_custom_call.1} parent=11 // pred_region
          _
        $region40: #{tpu_custom_call.1} parent=11 // pred_fallthru
          _
      $region12: #{tpu_custom_call.1} parent=5 // pred_fallthru
        _
      %p307 = scmp.lt.s32.totalorder %s20, 2
      // Predicated region
      $region41: #{tpu_custom_call.1} parent=5 // pred_check
        %p308 = pneg %p307
      $region42: #{tpu_custom_call.1} parent=5 // pred_check_branch
        %310 = sbr.rel (%p308) target = $region44
      $region43: #{tpu_custom_call.1} parent=5 // pred_region
        // Predicated region
        $region45: #{tpu_custom_call.1} parent=43 // pred_check
          %p311 = pneg %p40
        $region46: #{tpu_custom_call.1} parent=43 // pred_check_branch
          %313 = sbr.rel (%p311) target = $region48
        $region47: #{tpu_custom_call.1} parent=43 // pred_region
          %p314 = scmp.lt.s32.totalorder %s20, 1
          %s315 = scalar_select %p314, %s20, 1
          %s316 = smul.addr %s315, 2
          %s317 = smul.addr %s316, 4
          %s318 = scalar_lea.vmem %s0, %s317
        $region48: #{tpu_custom_call.1} parent=43 // pred_fallthru
          _
        // Predicated region
        $region49: #{tpu_custom_call.1} parent=43 // pred_check
          %p319 = pneg %p66
        $region50: #{tpu_custom_call.1} parent=43 // pred_check_branch
          %321 = sbr.rel (%p319) target = $region52
        $region51: #{tpu_custom_call.1} parent=43 // pred_region
          %p322 = scmp.lt.s32.totalorder %s20, 1
          %s323 = scalar_select %p322, %s20, 1
          %s324 = smul.addr %s323, 2
          %s325 = scalar_lea.vmem %s1, %s324
        $region52: #{tpu_custom_call.1} parent=43 // pred_fallthru
          _
      $region44: #{tpu_custom_call.1} parent=5 // pred_fallthru
        _
      %p326 = scmp.le.s32.totalorder 1, %s20
      %p327 = scmp.lt.s32.totalorder %s20, 3
      %p328 = pnand %p326, %p327
      %p329 = pneg %p328
      // Predicated region
      $region53: #{tpu_custom_call.1} parent=5 // pred_check
        _
      $region54: #{tpu_custom_call.1} parent=5 // pred_check_branch
        %331 = sbr.rel (%p328) target = $region56
      $region55: #{tpu_custom_call.1} parent=5 // pred_region
        %s332 = ssub.s32 %s20, 1
        %p333 = scmp.lt.s32.totalorder %s25, 1
        %s334 = scalar_select %p333, %s25, 1
        %s335 = smul.addr %s334, 2
        %s336 = smul.addr %s335, 4
        %s337 = scalar_lea.vmem %s0, %s336
        %p338 = pneg %p46
        %p339 = pneg %p43
        %p340 = scmp.lt.s32.totalorder %s25, 1
        %s341 = scalar_select %p340, %s25, 1
        %s342 = smul.addr %s341, 2
        %s343 = scalar_lea.vmem %s1, %s342
        %p344 = pneg %p72
        %p345 = pneg %p69
        %p346 = pneg %p93
        %p347 = pneg %p90
        %p348 = pneg %p114
        %p349 = pneg %p111
        %p350 = pneg %p135
        %p351 = pneg %p132
        %p352 = pneg %p156
        %p353 = pneg %p153
        %p354 = pneg %p177
        %p355 = pneg %p174
        %p356 = pneg %p198
        %p357 = pneg %p195
        %p358 = pneg %p219
        %p359 = pneg %p216
        %p360 = pneg %p245
        %p361 = pneg %p242
        %s362 = sand.u32 %s232, 1
        %s363 = scalar_lea.sflag [#allocation3], %s362
        %s364 = sand.u32 %s232, 1
        %s365 = smul.addr %s364, 64
        %s366 = scalar_lea.vmem [#allocation2], %s365
        %p367 = pneg %p271
        %p368 = pneg %p268
        %p369 = scmp.lt.s32.totalorder %s25, 1
        %s370 = scalar_select %p369, %s25, 1
        %s371 = smul.addr %s370, 2
        %s372 = smul.addr %s371, 4
        %s373 = scalar_lea.vmem %s10, %s372
        %p374 = scmp.lt.s32.totalorder %s25, 1
        %s375 = scalar_select %p374, %s25, 1
        %s376 = smul.addr %s375, 2
        %s377 = smul.addr %s376, 4
        %s378 = scalar_lea.vmem %s0, %s377
        %p379 = scmp.lt.s32.totalorder %s25, 1
        %s380 = scalar_select %p379, %s25, 1
        %s381 = smul.addr %s380, 2
        %s382 = scalar_lea.vmem %s1, %s381
        %p383 = scmp.lt.s32.totalorder %s25, 1
        %s384 = scalar_select %p383, %s25, 1
        %s385 = smul.addr %s384, 2
        %s386 = smul.addr %s385, 4
        %s387 = scalar_lea.vmem %s10, %s386
        %v388 = vld [vmem:[%s2] sm:$0xff]
        %v389 = vld [vmem:[%s2 + $0x8] sm:$0xff]
        %v390 = vld [vmem:[%s2 + $0x10] sm:$0xff]
        %v391 = vld [vmem:[%s2 + $0x18] sm:$0xff]
        %v392 = vld [vmem:[%s3] sm:$0xff]
        %v393 = vld [vmem:[%s3 + $0x8] sm:$0xff]
        %v394 = vld [vmem:[%s3 + $0x10] sm:$0xff]
        %v395 = vld [vmem:[%s3 + $0x18] sm:$0xff]
        %v396 = vld [vmem:[%s5] sm:$0xff]
        %v397 = vld [vmem:[%s5 + $0x8] sm:$0xff]
        %v398 = vld [vmem:[%s5 + $0x10] sm:$0xff]
        %v399 = vld [vmem:[%s5 + $0x18] sm:$0xff]
        %v400 = vld [vmem:[%s6] sm:$0x7]
        %v401 = vld [vmem:[%s7] sm:$0x7]
        %v402 = vld [vmem:[%s4] sm:$0xff]
        %v403 = vld [vmem:[%s4 + $0x8] sm:$0xff]
        %v404 = vld [vmem:[%s4 + $0x10] sm:$0xff]
        %v405 = vld [vmem:[%s4 + $0x18] sm:$0xff]
        %v406 = vld [vmem:[%s8] sm:$0xff]
        %v407 = vld [vmem:[%s8 + $0x8] sm:$0xff]
        %v408 = vld [vmem:[%s8 + $0x10] sm:$0x3]
        %v409 = vld [vmem:[%s8 + $0x18] sm:$0x3]
        %v410 = vld [vmem:[%s378] sm:$0x77]
        %v411 = vld [vmem:[%s382] sm:$0x3]
        %413 = vset.pattern.permute.xlu0 3
        %414 = vperm.xlu0 %413, %v388
        %v415 = vpop.permute.xlu0 %414
        %418 = vset.pattern.permute.xlu0 3
        %419 = vperm.xlu0 %418, %v389
        %v420 = vpop.permute.xlu0 %419
        %423 = vset.pattern.permute.xlu0 3
        %424 = vperm.xlu0 %423, %v390
        %v425 = vpop.permute.xlu0 %424
        %428 = vset.pattern.permute.xlu0 3
        %429 = vperm.xlu0 %428, %v391
        %v430 = vpop.permute.xlu0 %429
        %v433 = vlaneseq
        %v434 = vshrl.u32 %v433, 7
        %v435 = vsub.s32 0, %v434
        %v436 = vrot.slane %v411, %v435
        %v437 = vlaneseq
        %v438 = vshrl.u32 %v437, 7
        %v439 = vsub.s32 1, %v438
        %v440 = vrot.slane %v411, %v439
        %v443 = vmul.f32 %v415, %v436
        %v444 = vmul.f32 %v415, %v440
        %v445 = vmul.f32 %v420, %v436
        %v446 = vmul.f32 %v420, %v440
        %v447 = vmul.f32 %v425, %v436
        %v448 = vmul.f32 %v425, %v440
        %v449 = vmul.f32 %v430, %v436
        %v450 = vmul.f32 %v430, %v440
        %v452 = vcombine.high %v410, %v410
        %vm453 = vcmask 23552
        %v454 = vsel %vm453, %v388, 0
        %v456 = vsel %vm453, %v389, 0
        %v458 = vsel %vm453, %v390, 0
        %v460 = vsel %vm453, %v391, 0
        %vm462 = vcmask 1042432
        %v463 = vsel %vm462, %v410, 0
        %v465 = vsel %vm462, %v452, 0
        %467 = vmatprep.subr.mxu0 0.0
        %468 = vmatpush1.msra.mxu0 0.0
        %469 = vmatprep.subr.mxu0 0.0
        %470 = vmatpush1.msra.mxu0 0.0
        %471 = vmatprep.subr.mxu0 0.0
        %472 = vmatpush1.msra.mxu0 0.0
        %473 = vmatprep.subr.mxu0 0.0
        %474 = vmatpush1.msra.mxu0 0.0
        %475 = vmatprep.subr.mxu0 0.0
        %476 = vmatpush1.msra.mxu0 0.0
        %477 = vmatprep.subr.mxu0 0.0
        %478 = vmatpush1.msra.mxu0 0.0
        %479 = vmatprep.subr.mxu0 0.0
        %480 = vmatpush1.msra.mxu0 0.0
        %481 = vmatprep.subr.mxu0 0.0
        %482 = vmatpush1.msra.mxu0 0.0
        %483 = vmatprep.subr.mxu0 0.0
        %484 = vmatpush1.msra.mxu0 0.0
        %485 = vmatprep.subr.mxu0 0.0
        %486 = vmatpush1.msra.mxu0 0.0
        %487 = vmatprep.subr.mxu0 0.0
        %488 = vmatpush1.msra.mxu0 0.0
        %489 = vmatprep.subr.mxu0 0.0
        %490 = vmatpush1.msra.mxu0 0.0
        %491 = vmatprep.subr.mxu0 0.0
        %492 = vmatpush1.msra.mxu0 0.0
        %493 = vmatprep.subr.mxu0 0.0
        %494 = vmatpush1.msra.mxu0 0.0
        %495 = vmatprep.subr.mxu0 0.0
        %496 = vmatpush1.msra.mxu0 0.0
        %497 = vmatprep.subr.mxu0 %v465
        %498 = vmatpush1.msra.mxu0 %v463
        %499 = vmatprep.subr.mxu0 0.0
        %500 = vmatpush2.msra.mxu0 0.0
        %501 = vmatprep.subr.mxu0 0.0
        %502 = vmatpush2.msra.mxu0 0.0
        %503 = vmatprep.subr.mxu0 0.0
        %504 = vmatpush2.msra.mxu0 0.0
        %505 = vmatprep.subr.mxu0 0.0
        %506 = vmatpush2.msra.mxu0 0.0
        %507 = vmatprep.subr.mxu0 0.0
        %508 = vmatpush2.msra.mxu0 0.0
        %509 = vmatprep.subr.mxu0 0.0
        %510 = vmatpush2.msra.mxu0 0.0
        %511 = vmatprep.subr.mxu0 0.0
        %512 = vmatpush2.msra.mxu0 0.0
        %513 = vmatprep.subr.mxu0 0.0
        %514 = vmatpush2.msra.mxu0 0.0
        %515 = vmatprep.subr.mxu0 0.0
        %516 = vmatpush2.msra.mxu0 0.0
        %517 = vmatprep.subr.mxu0 0.0
        %518 = vmatpush2.msra.mxu0 0.0
        %519 = vmatprep.subr.mxu0 0.0
        %520 = vmatpush2.msra.mxu0 0.0
        %521 = vmatprep.subr.mxu0 0.0
        %522 = vmatpush2.msra.mxu0 0.0
        %523 = vmatprep.subr.mxu0 0.0
        %524 = vmatpush2.msra.mxu0 0.0
        %525 = vmatprep.subr.mxu0 0.0
        %526 = vmatpush2.msra.mxu0 0.0
        %527 = vmatprep.subr.mxu0 0.0
        %528 = vmatpush2.msra.mxu0 0.0
        %529 = vmatprep.subr.mxu0 0.0
        %530 = vmatpush2.msra.mxu0 0.0
        %531 = vmatprep.mubr.f32.mxu0 0.0
        %532 = vmatmul.mubr.f32.gmra.mxu0 %v454
        %v533 = vpop.f32.mrf.mxu0
        %v534 = vadd.f32 %v443, %v533
        %v535 = vpop.f32.mrf.mxu0
        %v536 = vadd.f32 %v444, %v535
        %537 = vmatprep.mubr.f32.mxu0 0.0
        %538 = vmatmul.mubr.f32.gmra.mxu0 %v456
        %v539 = vpop.f32.mrf.mxu0
        %v540 = vadd.f32 %v445, %v539
        %v541 = vpop.f32.mrf.mxu0
        %v542 = vadd.f32 %v446, %v541
        %543 = vmatprep.mubr.f32.mxu0 0.0
        %544 = vmatmul.mubr.f32.gmra.mxu0 %v458
        %v545 = vpop.f32.mrf.mxu0
        %v546 = vadd.f32 %v447, %v545
        %v547 = vpop.f32.mrf.mxu0
        %v548 = vadd.f32 %v448, %v547
        %549 = vmatprep.mubr.f32.mxu0 0.0
        %550 = vmatmul.mubr.f32.gmra.mxu0 %v460
        %v551 = vpop.f32.mrf.mxu0
        %v552 = vadd.f32 %v449, %v551
        %v553 = vpop.f32.mrf.mxu0
        %v554 = vadd.f32 %v450, %v553
        %555 = vdwg.mxu0
        %557 = vset.pattern.permute.xlu0 0
        %558 = vperm.xlu0 %557, %v392
        %v559 = vpop.permute.xlu0 %558
        %562 = vset.pattern.permute.xlu0 0
        %563 = vperm.xlu0 %562, %v393
        %v564 = vpop.permute.xlu0 %563
        %567 = vset.pattern.permute.xlu0 0
        %568 = vperm.xlu0 %567, %v394
        %v569 = vpop.permute.xlu0 %568
        %572 = vset.pattern.permute.xlu0 0
        %573 = vperm.xlu0 %572, %v395
        %v574 = vpop.permute.xlu0 %573
        %v576 = vadd.f32 %v534, %v559
        %v577 = vadd.f32 %v536, %v559
        %v578 = vadd.f32 %v540, %v564
        %v579 = vadd.f32 %v542, %v564
        %v580 = vadd.f32 %v546, %v569
        %v581 = vadd.f32 %v548, %v569
        %v582 = vadd.f32 %v552, %v574
        %v583 = vadd.f32 %v554, %v574
        %584 = vrot.lane.b32.xlu0 %v576, 2
        %v585 = vpop.permute.xlu0 %584
        %586 = vrot.lane.b32.xlu0 %v578, 2
        %v587 = vpop.permute.xlu0 %586
        %588 = vrot.lane.b32.xlu0 %v580, 2
        %v589 = vpop.permute.xlu0 %588
        %590 = vrot.lane.b32.xlu0 %v582, 2
        %v591 = vpop.permute.xlu0 %590
        %592 = vrot.lane.b32.xlu0 %v577, 2
        %v593 = vpop.permute.xlu0 %592
        %594 = vrot.lane.b32.xlu0 %v579, 2
        %v595 = vpop.permute.xlu0 %594
        %596 = vrot.lane.b32.xlu0 %v581, 2
        %v597 = vpop.permute.xlu0 %596
        %598 = vrot.lane.b32.xlu0 %v583, 2
        %v599 = vpop.permute.xlu0 %598
        %v600 = vlaneseq
        %v601 = vand.u32 %v600, 127
        %vm602 = vcmp.lt.s32.totalorder %v601, 2
        %v603 = vsel %vm602, %v585, %v593
        %v604 = vsel %vm602, %v587, %v595
        %v605 = vsel %vm602, %v589, %v597
        %v606 = vsel %vm602, %v591, %v599
        %v607 = vsel %vm602, %v593, %v585
        %v608 = vsel %vm602, %v595, %v587
        %v609 = vsel %vm602, %v597, %v589
        %v610 = vsel %vm602, %v599, %v591
        %v611 = vlaneseq
        %v612 = vshrl.u32 %v611, 7
        %v613 = vsub.s32 5, %v612
        %v614 = vrot.slane %v406, %v613
        %v615 = vlaneseq
        %v616 = vshrl.u32 %v615, 7
        %v617 = vsub.s32 5, %v616
        %v618 = vrot.slane %v407, %v617
        %v619 = vmul.f32 %v607, %v614
        %v620 = vmul.f32 %v603, %v618
        %v621 = vmul.f32 %v608, %v614
        %v622 = vmul.f32 %v604, %v618
        %v623 = vmul.f32 %v609, %v614
        %v624 = vmul.f32 %v605, %v618
        %v625 = vmul.f32 %v610, %v614
        %v626 = vmul.f32 %v606, %v618
        %627 = vrot.lane.b32.xlu0 %v576, 1
        %v628 = vpop.permute.xlu0 %627
        %629 = vrot.lane.b32.xlu0 %v578, 1
        %v630 = vpop.permute.xlu0 %629
        %631 = vrot.lane.b32.xlu0 %v580, 1
        %v632 = vpop.permute.xlu0 %631
        %633 = vrot.lane.b32.xlu0 %v582, 1
        %v634 = vpop.permute.xlu0 %633
        %635 = vrot.lane.b32.xlu0 %v577, 1
        %v636 = vpop.permute.xlu0 %635
        %637 = vrot.lane.b32.xlu0 %v579, 1
        %v638 = vpop.permute.xlu0 %637
        %639 = vrot.lane.b32.xlu0 %v581, 1
        %v640 = vpop.permute.xlu0 %639
        %641 = vrot.lane.b32.xlu0 %v583, 1
        %v642 = vpop.permute.xlu0 %641
        %vm643 = vcmp.lt.s32.totalorder %v601, 1
        %v644 = vsel %vm643, %v628, %v636
        %v645 = vsel %vm643, %v630, %v638
        %v646 = vsel %vm643, %v632, %v640
        %v647 = vsel %vm643, %v634, %v642
        %v648 = vsel %vm643, %v636, %v628
        %v649 = vsel %vm643, %v638, %v630
        %v650 = vsel %vm643, %v640, %v632
        %v651 = vsel %vm643, %v642, %v634
        %v652 = vlaneseq
        %v653 = vshrl.u32 %v652, 7
        %v654 = vsub.s32 6, %v653
        %v655 = vrot.slane %v406, %v654
        %v656 = vlaneseq
        %v657 = vshrl.u32 %v656, 7
        %v658 = vsub.s32 6, %v657
        %v659 = vrot.slane %v407, %v658
        %v660 = vmul.f32 %v648, %v655
        %v661 = vmul.f32 %v644, %v659
        %v662 = vmul.f32 %v649, %v655
        %v663 = vmul.f32 %v645, %v659
        %v664 = vmul.f32 %v650, %v655
        %v665 = vmul.f32 %v646, %v659
        %v666 = vmul.f32 %v651, %v655
        %v667 = vmul.f32 %v647, %v659
        %668 = vrot.lane.b32.xlu0 %v576, 127
        %v669 = vpop.permute.xlu0 %668
        %670 = vrot.lane.b32.xlu0 %v578, 127
        %v671 = vpop.permute.xlu0 %670
        %672 = vrot.lane.b32.xlu0 %v580, 127
        %v673 = vpop.permute.xlu0 %672
        %674 = vrot.lane.b32.xlu0 %v582, 127
        %v675 = vpop.permute.xlu0 %674
        %676 = vrot.lane.b32.xlu0 %v577, 127
        %v677 = vpop.permute.xlu0 %676
        %678 = vrot.lane.b32.xlu0 %v579, 127
        %v679 = vpop.permute.xlu0 %678
        %680 = vrot.lane.b32.xlu0 %v581, 127
        %v681 = vpop.permute.xlu0 %680
        %682 = vrot.lane.b32.xlu0 %v583, 127
        %v683 = vpop.permute.xlu0 %682
        %vm684 = vcmp.lt.s32.totalorder %v601, 127
        %v685 = vsel %vm684, %v669, %v677
        %v686 = vsel %vm684, %v671, %v679
        %v687 = vsel %vm684, %v673, %v681
        %v688 = vsel %vm684, %v675, %v683
        %v689 = vsel %vm684, %v677, %v669
        %v690 = vsel %vm684, %v679, %v671
        %v691 = vsel %vm684, %v681, %v673
        %v692 = vsel %vm684, %v683, %v675
        %v693 = vlaneseq
        %v694 = vshrl.u32 %v693, 7
        %v695 = vsub.s32 0, %v694
        %v696 = vrot.slane %v408, %v695
        %v697 = vlaneseq
        %v698 = vshrl.u32 %v697, 7
        %v699 = vsub.s32 0, %v698
        %v700 = vrot.slane %v409, %v699
        %v701 = vmul.f32 %v685, %v696
        %v702 = vmul.f32 %v689, %v700
        %v703 = vmul.f32 %v686, %v696
        %v704 = vmul.f32 %v690, %v700
        %v705 = vmul.f32 %v687, %v696
        %v706 = vmul.f32 %v691, %v700
        %v707 = vmul.f32 %v688, %v696
        %v708 = vmul.f32 %v692, %v700
        %709 = vrot.lane.b32.xlu0 %v576, 126
        %v710 = vpop.permute.xlu0 %709
        %711 = vrot.lane.b32.xlu0 %v578, 126
        %v712 = vpop.permute.xlu0 %711
        %713 = vrot.lane.b32.xlu0 %v580, 126
        %v714 = vpop.permute.xlu0 %713
        %715 = vrot.lane.b32.xlu0 %v582, 126
        %v716 = vpop.permute.xlu0 %715
        %717 = vrot.lane.b32.xlu0 %v577, 126
        %v718 = vpop.permute.xlu0 %717
        %719 = vrot.lane.b32.xlu0 %v579, 126
        %v720 = vpop.permute.xlu0 %719
        %721 = vrot.lane.b32.xlu0 %v581, 126
        %v722 = vpop.permute.xlu0 %721
        %723 = vrot.lane.b32.xlu0 %v583, 126
        %v724 = vpop.permute.xlu0 %723
        %vm725 = vcmp.lt.s32.totalorder %v601, 126
        %v726 = vsel %vm725, %v710, %v718
        %v727 = vsel %vm725, %v712, %v720
        %v728 = vsel %vm725, %v714, %v722
        %v729 = vsel %vm725, %v716, %v724
        %v730 = vsel %vm725, %v718, %v710
        %v731 = vsel %vm725, %v720, %v712
        %v732 = vsel %vm725, %v722, %v714
        %v733 = vsel %vm725, %v724, %v716
        %v734 = vlaneseq
        %v735 = vshrl.u32 %v734, 7
        %v736 = vsub.s32 1, %v735
        %v737 = vrot.slane %v408, %v736
        %v738 = vlaneseq
        %v739 = vshrl.u32 %v738, 7
        %v740 = vsub.s32 1, %v739
        %v741 = vrot.slane %v409, %v740
        %v742 = vmul.f32 %v726, %v737
        %v743 = vmul.f32 %v730, %v741
        %v744 = vmul.f32 %v727, %v737
        %v745 = vmul.f32 %v731, %v741
        %v746 = vmul.f32 %v728, %v737
        %v747 = vmul.f32 %v732, %v741
        %v748 = vmul.f32 %v729, %v737
        %v749 = vmul.f32 %v733, %v741
        %751 = vset.pattern.permute.xlu0 0
        %752 = vperm.xlu0 %751, %v402
        %v753 = vpop.permute.xlu0 %752
        %756 = vset.pattern.permute.xlu0 0
        %757 = vperm.xlu0 %756, %v403
        %v758 = vpop.permute.xlu0 %757
        %761 = vset.pattern.permute.xlu0 0
        %762 = vperm.xlu0 %761, %v404
        %v763 = vpop.permute.xlu0 %762
        %766 = vset.pattern.permute.xlu0 0
        %767 = vperm.xlu0 %766, %v405
        %v768 = vpop.permute.xlu0 %767
        %v770 = vmul.f32 %v619, %v753
        %v771 = vmul.f32 %v620, %v753
        %v772 = vmul.f32 %v621, %v758
        %v773 = vmul.f32 %v622, %v758
        %v774 = vmul.f32 %v623, %v763
        %v775 = vmul.f32 %v624, %v763
        %v776 = vmul.f32 %v625, %v768
        %v777 = vmul.f32 %v626, %v768
        %778 = vset.pattern.permute.xlu0 1
        %779 = vperm.xlu0 %778, %v402
        %v780 = vpop.permute.xlu0 %779
        %782 = vset.pattern.permute.xlu0 1
        %783 = vperm.xlu0 %782, %v403
        %v784 = vpop.permute.xlu0 %783
        %786 = vset.pattern.permute.xlu0 1
        %787 = vperm.xlu0 %786, %v404
        %v788 = vpop.permute.xlu0 %787
        %790 = vset.pattern.permute.xlu0 1
        %791 = vperm.xlu0 %790, %v405
        %v792 = vpop.permute.xlu0 %791
        %v794 = vmul.f32 %v660, %v780
        %v795 = vmul.f32 %v661, %v780
        %v796 = vmul.f32 %v662, %v784
        %v797 = vmul.f32 %v663, %v784
        %v798 = vmul.f32 %v664, %v788
        %v799 = vmul.f32 %v665, %v788
        %v800 = vmul.f32 %v666, %v792
        %v801 = vmul.f32 %v667, %v792
        %v802 = vadd.f32 %v770, %v794
        %v803 = vadd.f32 %v771, %v795
        %v804 = vadd.f32 %v772, %v796
        %v805 = vadd.f32 %v773, %v797
        %v806 = vadd.f32 %v774, %v798
        %v807 = vadd.f32 %v775, %v799
        %v808 = vadd.f32 %v776, %v800
        %v809 = vadd.f32 %v777, %v801
        %810 = vset.pattern.permute.xlu0 2
        %811 = vperm.xlu0 %810, %v402
        %v812 = vpop.permute.xlu0 %811
        %814 = vset.pattern.permute.xlu0 2
        %815 = vperm.xlu0 %814, %v403
        %v816 = vpop.permute.xlu0 %815
        %818 = vset.pattern.permute.xlu0 2
        %819 = vperm.xlu0 %818, %v404
        %v820 = vpop.permute.xlu0 %819
        %822 = vset.pattern.permute.xlu0 2
        %823 = vperm.xlu0 %822, %v405
        %v824 = vpop.permute.xlu0 %823
        %v826 = vmul.f32 %v576, %v812
        %v827 = vmul.f32 %v577, %v812
        %v828 = vmul.f32 %v578, %v816
        %v829 = vmul.f32 %v579, %v816
        %v830 = vmul.f32 %v580, %v820
        %v831 = vmul.f32 %v581, %v820
        %v832 = vmul.f32 %v582, %v824
        %v833 = vmul.f32 %v583, %v824
        %v834 = vadd.f32 %v802, %v826
        %v835 = vadd.f32 %v803, %v827
        %v836 = vadd.f32 %v804, %v828
        %v837 = vadd.f32 %v805, %v829
        %v838 = vadd.f32 %v806, %v830
        %v839 = vadd.f32 %v807, %v831
        %v840 = vadd.f32 %v808, %v832
        %v841 = vadd.f32 %v809, %v833
        %842 = vset.pattern.permute.xlu0 3
        %843 = vperm.xlu0 %842, %v402
        %v844 = vpop.permute.xlu0 %843
        %846 = vset.pattern.permute.xlu0 3
        %847 = vperm.xlu0 %846, %v403
        %v848 = vpop.permute.xlu0 %847
        %850 = vset.pattern.permute.xlu0 3
        %851 = vperm.xlu0 %850, %v404
        %v852 = vpop.permute.xlu0 %851
        %854 = vset.pattern.permute.xlu0 3
        %855 = vperm.xlu0 %854, %v405
        %v856 = vpop.permute.xlu0 %855
        %v858 = vmul.f32 %v701, %v844
        %v859 = vmul.f32 %v702, %v844
        %v860 = vmul.f32 %v703, %v848
        %v861 = vmul.f32 %v704, %v848
        %v862 = vmul.f32 %v705, %v852
        %v863 = vmul.f32 %v706, %v852
        %v864 = vmul.f32 %v707, %v856
        %v865 = vmul.f32 %v708, %v856
        %v866 = vadd.f32 %v834, %v858
        %v867 = vadd.f32 %v835, %v859
        %v868 = vadd.f32 %v836, %v860
        %v869 = vadd.f32 %v837, %v861
        %v870 = vadd.f32 %v838, %v862
        %v871 = vadd.f32 %v839, %v863
        %v872 = vadd.f32 %v840, %v864
        %v873 = vadd.f32 %v841, %v865
        %874 = vset.pattern.permute.xlu0 4
        %875 = vperm.xlu0 %874, %v402
        %v876 = vpop.permute.xlu0 %875
        %878 = vset.pattern.permute.xlu0 4
        %879 = vperm.xlu0 %878, %v403
        %v880 = vpop.permute.xlu0 %879
        %882 = vset.pattern.permute.xlu0 4
        %883 = vperm.xlu0 %882, %v404
        %v884 = vpop.permute.xlu0 %883
        %886 = vset.pattern.permute.xlu0 4
        %887 = vperm.xlu0 %886, %v405
        %v888 = vpop.permute.xlu0 %887
        %v890 = vmul.f32 %v742, %v876
        %v891 = vmul.f32 %v743, %v876
        %v892 = vmul.f32 %v744, %v880
        %v893 = vmul.f32 %v745, %v880
        %v894 = vmul.f32 %v746, %v884
        %v895 = vmul.f32 %v747, %v884
        %v896 = vmul.f32 %v748, %v888
        %v897 = vmul.f32 %v749, %v888
        %v898 = vadd.f32 %v866, %v890
        %v899 = vadd.f32 %v867, %v891
        %v900 = vadd.f32 %v868, %v892
        %v901 = vadd.f32 %v869, %v893
        %v902 = vadd.f32 %v870, %v894
        %v903 = vadd.f32 %v871, %v895
        %v904 = vadd.f32 %v872, %v896
        %v905 = vadd.f32 %v873, %v897
        %906 = vrot.lane.b32.xlu0 %v898, 32
        %v907 = vpop.permute.xlu0 %906
        %908 = vrot.lane.b32.xlu0 %v900, 32
        %v909 = vpop.permute.xlu0 %908
        %910 = vrot.lane.b32.xlu0 %v902, 32
        %v911 = vpop.permute.xlu0 %910
        %912 = vrot.lane.b32.xlu0 %v904, 32
        %v913 = vpop.permute.xlu0 %912
        %914 = vrot.lane.b32.xlu0 %v899, 32
        %v915 = vpop.permute.xlu0 %914
        %916 = vrot.lane.b32.xlu0 %v901, 32
        %v917 = vpop.permute.xlu0 %916
        %918 = vrot.lane.b32.xlu0 %v903, 32
        %v919 = vpop.permute.xlu0 %918
        %920 = vrot.lane.b32.xlu0 %v905, 32
        %v921 = vpop.permute.xlu0 %920
        %vm922 = vcmp.lt.s32.totalorder %v601, 32
        %v923 = vsel %vm922, %v907, %v915
        %v924 = vsel %vm922, %v909, %v917
        %v925 = vsel %vm922, %v911, %v919
        %v926 = vsel %vm922, %v913, %v921
        %v927 = vsel %vm922, %v915, %v907
        %v928 = vsel %vm922, %v917, %v909
        %v929 = vsel %vm922, %v919, %v911
        %v930 = vsel %vm922, %v921, %v913
        %v931 = vlaneseq
        %v932 = vshrl.u32 %v931, 7
        %v933 = vsub.s32 0, %v932
        %v934 = vrot.slane %v406, %v933
        %v935 = vlaneseq
        %v936 = vshrl.u32 %v935, 7
        %v937 = vsub.s32 0, %v936
        %v938 = vrot.slane %v407, %v937
        %v939 = vmul.f32 %v927, %v934
        %v940 = vmul.f32 %v923, %v938
        %v941 = vmul.f32 %v928, %v934
        %v942 = vmul.f32 %v924, %v938
        %v943 = vmul.f32 %v929, %v934
        %v944 = vmul.f32 %v925, %v938
        %v945 = vmul.f32 %v930, %v934
        %v946 = vmul.f32 %v926, %v938
        %947 = vset.pattern.permute.xlu0 5
        %948 = vperm.xlu0 %947, %v402
        %v949 = vpop.permute.xlu0 %948
        %951 = vset.pattern.permute.xlu0 5
        %952 = vperm.xlu0 %951, %v403
        %v953 = vpop.permute.xlu0 %952
        %955 = vset.pattern.permute.xlu0 5
        %956 = vperm.xlu0 %955, %v404
        %v957 = vpop.permute.xlu0 %956
        %959 = vset.pattern.permute.xlu0 5
        %960 = vperm.xlu0 %959, %v405
        %v961 = vpop.permute.xlu0 %960
        %v963 = vmul.f32 %v619, %v949
        %v964 = vmul.f32 %v620, %v949
        %v965 = vmul.f32 %v621, %v953
        %v966 = vmul.f32 %v622, %v953
        %v967 = vmul.f32 %v623, %v957
        %v968 = vmul.f32 %v624, %v957
        %v969 = vmul.f32 %v625, %v961
        %v970 = vmul.f32 %v626, %v961
        %971 = vset.pattern.permute.xlu0 6
        %972 = vperm.xlu0 %971, %v402
        %v973 = vpop.permute.xlu0 %972
        %975 = vset.pattern.permute.xlu0 6
        %976 = vperm.xlu0 %975, %v403
        %v977 = vpop.permute.xlu0 %976
        %979 = vset.pattern.permute.xlu0 6
        %980 = vperm.xlu0 %979, %v404
        %v981 = vpop.permute.xlu0 %980
        %983 = vset.pattern.permute.xlu0 6
        %984 = vperm.xlu0 %983, %v405
        %v985 = vpop.permute.xlu0 %984
        %v987 = vmul.f32 %v660, %v973
        %v988 = vmul.f32 %v661, %v973
        %v989 = vmul.f32 %v662, %v977
        %v990 = vmul.f32 %v663, %v977
        %v991 = vmul.f32 %v664, %v981
        %v992 = vmul.f32 %v665, %v981
        %v993 = vmul.f32 %v666, %v985
        %v994 = vmul.f32 %v667, %v985
        %v995 = vadd.f32 %v963, %v987
        %v996 = vadd.f32 %v964, %v988
        %v997 = vadd.f32 %v965, %v989
        %v998 = vadd.f32 %v966, %v990
        %v999 = vadd.f32 %v967, %v991
        %v1000 = vadd.f32 %v968, %v992
        %v1001 = vadd.f32 %v969, %v993
        %v1002 = vadd.f32 %v970, %v994
        %1003 = vset.pattern.permute.xlu0 7
        %1004 = vperm.xlu0 %1003, %v402
        %v1005 = vpop.permute.xlu0 %1004
        %1007 = vset.pattern.permute.xlu0 7
        %1008 = vperm.xlu0 %1007, %v403
        %v1009 = vpop.permute.xlu0 %1008
        %1011 = vset.pattern.permute.xlu0 7
        %1012 = vperm.xlu0 %1011, %v404
        %v1013 = vpop.permute.xlu0 %1012
        %1015 = vset.pattern.permute.xlu0 7
        %1016 = vperm.xlu0 %1015, %v405
        %v1017 = vpop.permute.xlu0 %1016
        %v1019 = vmul.f32 %v576, %v1005
        %v1020 = vmul.f32 %v577, %v1005
        %v1021 = vmul.f32 %v578, %v1009
        %v1022 = vmul.f32 %v579, %v1009
        %v1023 = vmul.f32 %v580, %v1013
        %v1024 = vmul.f32 %v581, %v1013
        %v1025 = vmul.f32 %v582, %v1017
        %v1026 = vmul.f32 %v583, %v1017
        %v1027 = vadd.f32 %v995, %v1019
        %v1028 = vadd.f32 %v996, %v1020
        %v1029 = vadd.f32 %v997, %v1021
        %v1030 = vadd.f32 %v998, %v1022
        %v1031 = vadd.f32 %v999, %v1023
        %v1032 = vadd.f32 %v1000, %v1024
        %v1033 = vadd.f32 %v1001, %v1025
        %v1034 = vadd.f32 %v1002, %v1026
        %1035 = vset.pattern.permute.xlu0 8
        %1036 = vperm.xlu0 %1035, %v402
        %v1037 = vpop.permute.xlu0 %1036
        %1039 = vset.pattern.permute.xlu0 8
        %1040 = vperm.xlu0 %1039, %v403
        %v1041 = vpop.permute.xlu0 %1040
        %1043 = vset.pattern.permute.xlu0 8
        %1044 = vperm.xlu0 %1043, %v404
        %v1045 = vpop.permute.xlu0 %1044
        %1047 = vset.pattern.permute.xlu0 8
        %1048 = vperm.xlu0 %1047, %v405
        %v1049 = vpop.permute.xlu0 %1048
        %v1051 = vmul.f32 %v701, %v1037
        %v1052 = vmul.f32 %v702, %v1037
        %v1053 = vmul.f32 %v703, %v1041
        %v1054 = vmul.f32 %v704, %v1041
        %v1055 = vmul.f32 %v705, %v1045
        %v1056 = vmul.f32 %v706, %v1045
        %v1057 = vmul.f32 %v707, %v1049
        %v1058 = vmul.f32 %v708, %v1049
        %v1059 = vadd.f32 %v1027, %v1051
        %v1060 = vadd.f32 %v1028, %v1052
        %v1061 = vadd.f32 %v1029, %v1053
        %v1062 = vadd.f32 %v1030, %v1054
        %v1063 = vadd.f32 %v1031, %v1055
        %v1064 = vadd.f32 %v1032, %v1056
        %v1065 = vadd.f32 %v1033, %v1057
        %v1066 = vadd.f32 %v1034, %v1058
        %1067 = vset.pattern.permute.xlu0 9
        %1068 = vperm.xlu0 %1067, %v402
        %v1069 = vpop.permute.xlu0 %1068
        %1071 = vset.pattern.permute.xlu0 9
        %1072 = vperm.xlu0 %1071, %v403
        %v1073 = vpop.permute.xlu0 %1072
        %1075 = vset.pattern.permute.xlu0 9
        %1076 = vperm.xlu0 %1075, %v404
        %v1077 = vpop.permute.xlu0 %1076
        %1079 = vset.pattern.permute.xlu0 9
        %1080 = vperm.xlu0 %1079, %v405
        %v1081 = vpop.permute.xlu0 %1080
        %v1083 = vmul.f32 %v742, %v1069
        %v1084 = vmul.f32 %v743, %v1069
        %v1085 = vmul.f32 %v744, %v1073
        %v1086 = vmul.f32 %v745, %v1073
        %v1087 = vmul.f32 %v746, %v1077
        %v1088 = vmul.f32 %v747, %v1077
        %v1089 = vmul.f32 %v748, %v1081
        %v1090 = vmul.f32 %v749, %v1081
        %v1091 = vadd.f32 %v1059, %v1083
        %v1092 = vadd.f32 %v1060, %v1084
        %v1093 = vadd.f32 %v1061, %v1085
        %v1094 = vadd.f32 %v1062, %v1086
        %v1095 = vadd.f32 %v1063, %v1087
        %v1096 = vadd.f32 %v1064, %v1088
        %v1097 = vadd.f32 %v1065, %v1089
        %v1098 = vadd.f32 %v1066, %v1090
        %1099 = vrot.lane.b32.xlu0 %v1091, 16
        %v1100 = vpop.permute.xlu0 %1099
        %1101 = vrot.lane.b32.xlu0 %v1093, 16
        %v1102 = vpop.permute.xlu0 %1101
        %1103 = vrot.lane.b32.xlu0 %v1095, 16
        %v1104 = vpop.permute.xlu0 %1103
        %1105 = vrot.lane.b32.xlu0 %v1097, 16
        %v1106 = vpop.permute.xlu0 %1105
        %1107 = vrot.lane.b32.xlu0 %v1092, 16
        %v1108 = vpop.permute.xlu0 %1107
        %1109 = vrot.lane.b32.xlu0 %v1094, 16
        %v1110 = vpop.permute.xlu0 %1109
        %1111 = vrot.lane.b32.xlu0 %v1096, 16
        %v1112 = vpop.permute.xlu0 %1111
        %1113 = vrot.lane.b32.xlu0 %v1098, 16
        %v1114 = vpop.permute.xlu0 %1113
        %vm1115 = vcmp.lt.s32.totalorder %v601, 16
        %v1116 = vsel %vm1115, %v1100, %v1108
        %v1117 = vsel %vm1115, %v1102, %v1110
        %v1118 = vsel %vm1115, %v1104, %v1112
        %v1119 = vsel %vm1115, %v1106, %v1114
        %v1120 = vsel %vm1115, %v1108, %v1100
        %v1121 = vsel %vm1115, %v1110, %v1102
        %v1122 = vsel %vm1115, %v1112, %v1104
        %v1123 = vsel %vm1115, %v1114, %v1106
        %v1124 = vlaneseq
        %v1125 = vshrl.u32 %v1124, 7
        %v1126 = vsub.s32 1, %v1125
        %v1127 = vrot.slane %v406, %v1126
        %v1128 = vlaneseq
        %v1129 = vshrl.u32 %v1128, 7
        %v1130 = vsub.s32 1, %v1129
        %v1131 = vrot.slane %v407, %v1130
        %v1132 = vmul.f32 %v1120, %v1127
        %v1133 = vmul.f32 %v1116, %v1131
        %v1134 = vmul.f32 %v1121, %v1127
        %v1135 = vmul.f32 %v1117, %v1131
        %v1136 = vmul.f32 %v1122, %v1127
        %v1137 = vmul.f32 %v1118, %v1131
        %v1138 = vmul.f32 %v1123, %v1127
        %v1139 = vmul.f32 %v1119, %v1131
        %v1140 = vadd.f32 %v939, %v1132
        %v1141 = vadd.f32 %v940, %v1133
        %v1142 = vadd.f32 %v941, %v1134
        %v1143 = vadd.f32 %v942, %v1135
        %v1144 = vadd.f32 %v943, %v1136
        %v1145 = vadd.f32 %v944, %v1137
        %v1146 = vadd.f32 %v945, %v1138
        %v1147 = vadd.f32 %v946, %v1139
        %1148 = vset.pattern.permute.xlu0 10
        %1149 = vperm.xlu0 %1148, %v402
        %v1150 = vpop.permute.xlu0 %1149
        %1152 = vset.pattern.permute.xlu0 10
        %1153 = vperm.xlu0 %1152, %v403
        %v1154 = vpop.permute.xlu0 %1153
        %1156 = vset.pattern.permute.xlu0 10
        %1157 = vperm.xlu0 %1156, %v404
        %v1158 = vpop.permute.xlu0 %1157
        %1160 = vset.pattern.permute.xlu0 10
        %1161 = vperm.xlu0 %1160, %v405
        %v1162 = vpop.permute.xlu0 %1161
        %v1164 = vmul.f32 %v619, %v1150
        %v1165 = vmul.f32 %v620, %v1150
        %v1166 = vmul.f32 %v621, %v1154
        %v1167 = vmul.f32 %v622, %v1154
        %v1168 = vmul.f32 %v623, %v1158
        %v1169 = vmul.f32 %v624, %v1158
        %v1170 = vmul.f32 %v625, %v1162
        %v1171 = vmul.f32 %v626, %v1162
        %1172 = vset.pattern.permute.xlu0 11
        %1173 = vperm.xlu0 %1172, %v402
        %v1174 = vpop.permute.xlu0 %1173
        %1176 = vset.pattern.permute.xlu0 11
        %1177 = vperm.xlu0 %1176, %v403
        %v1178 = vpop.permute.xlu0 %1177
        %1180 = vset.pattern.permute.xlu0 11
        %1181 = vperm.xlu0 %1180, %v404
        %v1182 = vpop.permute.xlu0 %1181
        %1184 = vset.pattern.permute.xlu0 11
        %1185 = vperm.xlu0 %1184, %v405
        %v1186 = vpop.permute.xlu0 %1185
        %v1188 = vmul.f32 %v660, %v1174
        %v1189 = vmul.f32 %v661, %v1174
        %v1190 = vmul.f32 %v662, %v1178
        %v1191 = vmul.f32 %v663, %v1178
        %v1192 = vmul.f32 %v664, %v1182
        %v1193 = vmul.f32 %v665, %v1182
        %v1194 = vmul.f32 %v666, %v1186
        %v1195 = vmul.f32 %v667, %v1186
        %v1196 = vadd.f32 %v1164, %v1188
        %v1197 = vadd.f32 %v1165, %v1189
        %v1198 = vadd.f32 %v1166, %v1190
        %v1199 = vadd.f32 %v1167, %v1191
        %v1200 = vadd.f32 %v1168, %v1192
        %v1201 = vadd.f32 %v1169, %v1193
        %v1202 = vadd.f32 %v1170, %v1194
        %v1203 = vadd.f32 %v1171, %v1195
        %1204 = vset.pattern.permute.xlu0 12
        %1205 = vperm.xlu0 %1204, %v402
        %v1206 = vpop.permute.xlu0 %1205
        %1208 = vset.pattern.permute.xlu0 12
        %1209 = vperm.xlu0 %1208, %v403
        %v1210 = vpop.permute.xlu0 %1209
        %1212 = vset.pattern.permute.xlu0 12
        %1213 = vperm.xlu0 %1212, %v404
        %v1214 = vpop.permute.xlu0 %1213
        %1216 = vset.pattern.permute.xlu0 12
        %1217 = vperm.xlu0 %1216, %v405
        %v1218 = vpop.permute.xlu0 %1217
        %v1220 = vmul.f32 %v576, %v1206
        %v1221 = vmul.f32 %v577, %v1206
        %v1222 = vmul.f32 %v578, %v1210
        %v1223 = vmul.f32 %v579, %v1210
        %v1224 = vmul.f32 %v580, %v1214
        %v1225 = vmul.f32 %v581, %v1214
        %v1226 = vmul.f32 %v582, %v1218
        %v1227 = vmul.f32 %v583, %v1218
        %v1228 = vadd.f32 %v1196, %v1220
        %v1229 = vadd.f32 %v1197, %v1221
        %v1230 = vadd.f32 %v1198, %v1222
        %v1231 = vadd.f32 %v1199, %v1223
        %v1232 = vadd.f32 %v1200, %v1224
        %v1233 = vadd.f32 %v1201, %v1225
        %v1234 = vadd.f32 %v1202, %v1226
        %v1235 = vadd.f32 %v1203, %v1227
        %1236 = vset.pattern.permute.xlu0 13
        %1237 = vperm.xlu0 %1236, %v402
        %v1238 = vpop.permute.xlu0 %1237
        %1240 = vset.pattern.permute.xlu0 13
        %1241 = vperm.xlu0 %1240, %v403
        %v1242 = vpop.permute.xlu0 %1241
        %1244 = vset.pattern.permute.xlu0 13
        %1245 = vperm.xlu0 %1244, %v404
        %v1246 = vpop.permute.xlu0 %1245
        %1248 = vset.pattern.permute.xlu0 13
        %1249 = vperm.xlu0 %1248, %v405
        %v1250 = vpop.permute.xlu0 %1249
        %v1252 = vmul.f32 %v701, %v1238
        %v1253 = vmul.f32 %v702, %v1238
        %v1254 = vmul.f32 %v703, %v1242
        %v1255 = vmul.f32 %v704, %v1242
        %v1256 = vmul.f32 %v705, %v1246
        %v1257 = vmul.f32 %v706, %v1246
        %v1258 = vmul.f32 %v707, %v1250
        %v1259 = vmul.f32 %v708, %v1250
        %v1260 = vadd.f32 %v1228, %v1252
        %v1261 = vadd.f32 %v1229, %v1253
        %v1262 = vadd.f32 %v1230, %v1254
        %v1263 = vadd.f32 %v1231, %v1255
        %v1264 = vadd.f32 %v1232, %v1256
        %v1265 = vadd.f32 %v1233, %v1257
        %v1266 = vadd.f32 %v1234, %v1258
        %v1267 = vadd.f32 %v1235, %v1259
        %1268 = vset.pattern.permute.xlu0 14
        %1269 = vperm.xlu0 %1268, %v402
        %v1270 = vpop.permute.xlu0 %1269
        %1272 = vset.pattern.permute.xlu0 14
        %1273 = vperm.xlu0 %1272, %v403
        %v1274 = vpop.permute.xlu0 %1273
        %1276 = vset.pattern.permute.xlu0 14
        %1277 = vperm.xlu0 %1276, %v404
        %v1278 = vpop.permute.xlu0 %1277
        %1280 = vset.pattern.permute.xlu0 14
        %1281 = vperm.xlu0 %1280, %v405
        %v1282 = vpop.permute.xlu0 %1281
        %v1284 = vmul.f32 %v742, %v1270
        %v1285 = vmul.f32 %v743, %v1270
        %v1286 = vmul.f32 %v744, %v1274
        %v1287 = vmul.f32 %v745, %v1274
        %v1288 = vmul.f32 %v746, %v1278
        %v1289 = vmul.f32 %v747, %v1278
        %v1290 = vmul.f32 %v748, %v1282
        %v1291 = vmul.f32 %v749, %v1282
        %v1292 = vadd.f32 %v1260, %v1284
        %v1293 = vadd.f32 %v1261, %v1285
        %v1294 = vadd.f32 %v1262, %v1286
        %v1295 = vadd.f32 %v1263, %v1287
        %v1296 = vadd.f32 %v1264, %v1288
        %v1297 = vadd.f32 %v1265, %v1289
        %v1298 = vadd.f32 %v1266, %v1290
        %v1299 = vadd.f32 %v1267, %v1291
        %v1300 = vadd.f32 %v1140, %v1292
        %v1301 = vadd.f32 %v1141, %v1293
        %v1302 = vadd.f32 %v1142, %v1294
        %v1303 = vadd.f32 %v1143, %v1295
        %v1304 = vadd.f32 %v1144, %v1296
        %v1305 = vadd.f32 %v1145, %v1297
        %v1306 = vadd.f32 %v1146, %v1298
        %v1307 = vadd.f32 %v1147, %v1299
        %1308 = vset.pattern.permute.xlu0 15
        %1309 = vperm.xlu0 %1308, %v402
        %v1310 = vpop.permute.xlu0 %1309
        %1312 = vset.pattern.permute.xlu0 15
        %1313 = vperm.xlu0 %1312, %v403
        %v1314 = vpop.permute.xlu0 %1313
        %1316 = vset.pattern.permute.xlu0 15
        %1317 = vperm.xlu0 %1316, %v404
        %v1318 = vpop.permute.xlu0 %1317
        %1320 = vset.pattern.permute.xlu0 15
        %1321 = vperm.xlu0 %1320, %v405
        %v1322 = vpop.permute.xlu0 %1321
        %v1324 = vmul.f32 %v619, %v1310
        %v1325 = vmul.f32 %v620, %v1310
        %v1326 = vmul.f32 %v621, %v1314
        %v1327 = vmul.f32 %v622, %v1314
        %v1328 = vmul.f32 %v623, %v1318
        %v1329 = vmul.f32 %v624, %v1318
        %v1330 = vmul.f32 %v625, %v1322
        %v1331 = vmul.f32 %v626, %v1322
        %1332 = vset.pattern.permute.xlu0 16
        %1333 = vperm.xlu0 %1332, %v402
        %v1334 = vpop.permute.xlu0 %1333
        %1336 = vset.pattern.permute.xlu0 16
        %1337 = vperm.xlu0 %1336, %v403
        %v1338 = vpop.permute.xlu0 %1337
        %1340 = vset.pattern.permute.xlu0 16
        %1341 = vperm.xlu0 %1340, %v404
        %v1342 = vpop.permute.xlu0 %1341
        %1344 = vset.pattern.permute.xlu0 16
        %1345 = vperm.xlu0 %1344, %v405
        %v1346 = vpop.permute.xlu0 %1345
        %v1348 = vmul.f32 %v660, %v1334
        %v1349 = vmul.f32 %v661, %v1334
        %v1350 = vmul.f32 %v662, %v1338
        %v1351 = vmul.f32 %v663, %v1338
        %v1352 = vmul.f32 %v664, %v1342
        %v1353 = vmul.f32 %v665, %v1342
        %v1354 = vmul.f32 %v666, %v1346
        %v1355 = vmul.f32 %v667, %v1346
        %v1356 = vadd.f32 %v1324, %v1348
        %v1357 = vadd.f32 %v1325, %v1349
        %v1358 = vadd.f32 %v1326, %v1350
        %v1359 = vadd.f32 %v1327, %v1351
        %v1360 = vadd.f32 %v1328, %v1352
        %v1361 = vadd.f32 %v1329, %v1353
        %v1362 = vadd.f32 %v1330, %v1354
        %v1363 = vadd.f32 %v1331, %v1355
        %1364 = vset.pattern.permute.xlu0 17
        %1365 = vperm.xlu0 %1364, %v402
        %v1366 = vpop.permute.xlu0 %1365
        %1368 = vset.pattern.permute.xlu0 17
        %1369 = vperm.xlu0 %1368, %v403
        %v1370 = vpop.permute.xlu0 %1369
        %1372 = vset.pattern.permute.xlu0 17
        %1373 = vperm.xlu0 %1372, %v404
        %v1374 = vpop.permute.xlu0 %1373
        %1376 = vset.pattern.permute.xlu0 17
        %1377 = vperm.xlu0 %1376, %v405
        %v1378 = vpop.permute.xlu0 %1377
        %v1380 = vmul.f32 %v576, %v1366
        %v1381 = vmul.f32 %v577, %v1366
        %v1382 = vmul.f32 %v578, %v1370
        %v1383 = vmul.f32 %v579, %v1370
        %v1384 = vmul.f32 %v580, %v1374
        %v1385 = vmul.f32 %v581, %v1374
        %v1386 = vmul.f32 %v582, %v1378
        %v1387 = vmul.f32 %v583, %v1378
        %v1388 = vadd.f32 %v1356, %v1380
        %v1389 = vadd.f32 %v1357, %v1381
        %v1390 = vadd.f32 %v1358, %v1382
        %v1391 = vadd.f32 %v1359, %v1383
        %v1392 = vadd.f32 %v1360, %v1384
        %v1393 = vadd.f32 %v1361, %v1385
        %v1394 = vadd.f32 %v1362, %v1386
        %v1395 = vadd.f32 %v1363, %v1387
        %1396 = vset.pattern.permute.xlu0 18
        %1397 = vperm.xlu0 %1396, %v402
        %v1398 = vpop.permute.xlu0 %1397
        %1400 = vset.pattern.permute.xlu0 18
        %1401 = vperm.xlu0 %1400, %v403
        %v1402 = vpop.permute.xlu0 %1401
        %1404 = vset.pattern.permute.xlu0 18
        %1405 = vperm.xlu0 %1404, %v404
        %v1406 = vpop.permute.xlu0 %1405
        %1408 = vset.pattern.permute.xlu0 18
        %1409 = vperm.xlu0 %1408, %v405
        %v1410 = vpop.permute.xlu0 %1409
        %v1412 = vmul.f32 %v701, %v1398
        %v1413 = vmul.f32 %v702, %v1398
        %v1414 = vmul.f32 %v703, %v1402
        %v1415 = vmul.f32 %v704, %v1402
        %v1416 = vmul.f32 %v705, %v1406
        %v1417 = vmul.f32 %v706, %v1406
        %v1418 = vmul.f32 %v707, %v1410
        %v1419 = vmul.f32 %v708, %v1410
        %v1420 = vadd.f32 %v1388, %v1412
        %v1421 = vadd.f32 %v1389, %v1413
        %v1422 = vadd.f32 %v1390, %v1414
        %v1423 = vadd.f32 %v1391, %v1415
        %v1424 = vadd.f32 %v1392, %v1416
        %v1425 = vadd.f32 %v1393, %v1417
        %v1426 = vadd.f32 %v1394, %v1418
        %v1427 = vadd.f32 %v1395, %v1419
        %1428 = vset.pattern.permute.xlu0 19
        %1429 = vperm.xlu0 %1428, %v402
        %v1430 = vpop.permute.xlu0 %1429
        %1432 = vset.pattern.permute.xlu0 19
        %1433 = vperm.xlu0 %1432, %v403
        %v1434 = vpop.permute.xlu0 %1433
        %1436 = vset.pattern.permute.xlu0 19
        %1437 = vperm.xlu0 %1436, %v404
        %v1438 = vpop.permute.xlu0 %1437
        %1440 = vset.pattern.permute.xlu0 19
        %1441 = vperm.xlu0 %1440, %v405
        %v1442 = vpop.permute.xlu0 %1441
        %v1444 = vmul.f32 %v742, %v1430
        %v1445 = vmul.f32 %v743, %v1430
        %v1446 = vmul.f32 %v744, %v1434
        %v1447 = vmul.f32 %v745, %v1434
        %v1448 = vmul.f32 %v746, %v1438
        %v1449 = vmul.f32 %v747, %v1438
        %v1450 = vmul.f32 %v748, %v1442
        %v1451 = vmul.f32 %v749, %v1442
        %v1452 = vadd.f32 %v1420, %v1444
        %v1453 = vadd.f32 %v1421, %v1445
        %v1454 = vadd.f32 %v1422, %v1446
        %v1455 = vadd.f32 %v1423, %v1447
        %v1456 = vadd.f32 %v1424, %v1448
        %v1457 = vadd.f32 %v1425, %v1449
        %v1458 = vadd.f32 %v1426, %v1450
        %v1459 = vadd.f32 %v1427, %v1451
        %1460 = vrot.lane.b32.xlu0 %v1452, 112
        %v1461 = vpop.permute.xlu0 %1460
        %1462 = vrot.lane.b32.xlu0 %v1454, 112
        %v1463 = vpop.permute.xlu0 %1462
        %1464 = vrot.lane.b32.xlu0 %v1456, 112
        %v1465 = vpop.permute.xlu0 %1464
        %1466 = vrot.lane.b32.xlu0 %v1458, 112
        %v1467 = vpop.permute.xlu0 %1466
        %1468 = vrot.lane.b32.xlu0 %v1453, 112
        %v1469 = vpop.permute.xlu0 %1468
        %1470 = vrot.lane.b32.xlu0 %v1455, 112
        %v1471 = vpop.permute.xlu0 %1470
        %1472 = vrot.lane.b32.xlu0 %v1457, 112
        %v1473 = vpop.permute.xlu0 %1472
        %1474 = vrot.lane.b32.xlu0 %v1459, 112
        %v1475 = vpop.permute.xlu0 %1474
        %vm1476 = vcmp.lt.s32.totalorder %v601, 112
        %v1477 = vsel %vm1476, %v1461, %v1469
        %v1478 = vsel %vm1476, %v1463, %v1471
        %v1479 = vsel %vm1476, %v1465, %v1473
        %v1480 = vsel %vm1476, %v1467, %v1475
        %v1481 = vsel %vm1476, %v1469, %v1461
        %v1482 = vsel %vm1476, %v1471, %v1463
        %v1483 = vsel %vm1476, %v1473, %v1465
        %v1484 = vsel %vm1476, %v1475, %v1467
        %v1485 = vlaneseq
        %v1486 = vshrl.u32 %v1485, 7
        %v1487 = vsub.s32 3, %v1486
        %v1488 = vrot.slane %v406, %v1487
        %v1489 = vlaneseq
        %v1490 = vshrl.u32 %v1489, 7
        %v1491 = vsub.s32 3, %v1490
        %v1492 = vrot.slane %v407, %v1491
        %v1493 = vmul.f32 %v1477, %v1488
        %v1494 = vmul.f32 %v1481, %v1492
        %v1495 = vmul.f32 %v1478, %v1488
        %v1496 = vmul.f32 %v1482, %v1492
        %v1497 = vmul.f32 %v1479, %v1488
        %v1498 = vmul.f32 %v1483, %v1492
        %v1499 = vmul.f32 %v1480, %v1488
        %v1500 = vmul.f32 %v1484, %v1492
        %v1501 = vadd.f32 %v1300, %v1493
        %v1502 = vadd.f32 %v1301, %v1494
        %v1503 = vadd.f32 %v1302, %v1495
        %v1504 = vadd.f32 %v1303, %v1496
        %v1505 = vadd.f32 %v1304, %v1497
        %v1506 = vadd.f32 %v1305, %v1498
        %v1507 = vadd.f32 %v1306, %v1499
        %v1508 = vadd.f32 %v1307, %v1500
        %1509 = vset.pattern.permute.xlu0 20
        %1510 = vperm.xlu0 %1509, %v402
        %v1511 = vpop.permute.xlu0 %1510
        %1513 = vset.pattern.permute.xlu0 20
        %1514 = vperm.xlu0 %1513, %v403
        %v1515 = vpop.permute.xlu0 %1514
        %1517 = vset.pattern.permute.xlu0 20
        %1518 = vperm.xlu0 %1517, %v404
        %v1519 = vpop.permute.xlu0 %1518
        %1521 = vset.pattern.permute.xlu0 20
        %1522 = vperm.xlu0 %1521, %v405
        %v1523 = vpop.permute.xlu0 %1522
        %v1525 = vmul.f32 %v619, %v1511
        %v1526 = vmul.f32 %v620, %v1511
        %v1527 = vmul.f32 %v621, %v1515
        %v1528 = vmul.f32 %v622, %v1515
        %v1529 = vmul.f32 %v623, %v1519
        %v1530 = vmul.f32 %v624, %v1519
        %v1531 = vmul.f32 %v625, %v1523
        %v1532 = vmul.f32 %v626, %v1523
        %1533 = vset.pattern.permute.xlu0 21
        %1534 = vperm.xlu0 %1533, %v402
        %v1535 = vpop.permute.xlu0 %1534
        %1537 = vset.pattern.permute.xlu0 21
        %1538 = vperm.xlu0 %1537, %v403
        %v1539 = vpop.permute.xlu0 %1538
        %1541 = vset.pattern.permute.xlu0 21
        %1542 = vperm.xlu0 %1541, %v404
        %v1543 = vpop.permute.xlu0 %1542
        %1545 = vset.pattern.permute.xlu0 21
        %1546 = vperm.xlu0 %1545, %v405
        %v1547 = vpop.permute.xlu0 %1546
        %v1549 = vmul.f32 %v660, %v1535
        %v1550 = vmul.f32 %v661, %v1535
        %v1551 = vmul.f32 %v662, %v1539
        %v1552 = vmul.f32 %v663, %v1539
        %v1553 = vmul.f32 %v664, %v1543
        %v1554 = vmul.f32 %v665, %v1543
        %v1555 = vmul.f32 %v666, %v1547
        %v1556 = vmul.f32 %v667, %v1547
        %v1557 = vadd.f32 %v1525, %v1549
        %v1558 = vadd.f32 %v1526, %v1550
        %v1559 = vadd.f32 %v1527, %v1551
        %v1560 = vadd.f32 %v1528, %v1552
        %v1561 = vadd.f32 %v1529, %v1553
        %v1562 = vadd.f32 %v1530, %v1554
        %v1563 = vadd.f32 %v1531, %v1555
        %v1564 = vadd.f32 %v1532, %v1556
        %1565 = vset.pattern.permute.xlu0 22
        %1566 = vperm.xlu0 %1565, %v402
        %v1567 = vpop.permute.xlu0 %1566
        %1569 = vset.pattern.permute.xlu0 22
        %1570 = vperm.xlu0 %1569, %v403
        %v1571 = vpop.permute.xlu0 %1570
        %1573 = vset.pattern.permute.xlu0 22
        %1574 = vperm.xlu0 %1573, %v404
        %v1575 = vpop.permute.xlu0 %1574
        %1577 = vset.pattern.permute.xlu0 22
        %1578 = vperm.xlu0 %1577, %v405
        %v1579 = vpop.permute.xlu0 %1578
        %v1581 = vmul.f32 %v576, %v1567
        %v1582 = vmul.f32 %v577, %v1567
        %v1583 = vmul.f32 %v578, %v1571
        %v1584 = vmul.f32 %v579, %v1571
        %v1585 = vmul.f32 %v580, %v1575
        %v1586 = vmul.f32 %v581, %v1575
        %v1587 = vmul.f32 %v582, %v1579
        %v1588 = vmul.f32 %v583, %v1579
        %v1589 = vadd.f32 %v1557, %v1581
        %v1590 = vadd.f32 %v1558, %v1582
        %v1591 = vadd.f32 %v1559, %v1583
        %v1592 = vadd.f32 %v1560, %v1584
        %v1593 = vadd.f32 %v1561, %v1585
        %v1594 = vadd.f32 %v1562, %v1586
        %v1595 = vadd.f32 %v1563, %v1587
        %v1596 = vadd.f32 %v1564, %v1588
        %1597 = vset.pattern.permute.xlu0 23
        %1598 = vperm.xlu0 %1597, %v402
        %v1599 = vpop.permute.xlu0 %1598
        %1601 = vset.pattern.permute.xlu0 23
        %1602 = vperm.xlu0 %1601, %v403
        %v1603 = vpop.permute.xlu0 %1602
        %1605 = vset.pattern.permute.xlu0 23
        %1606 = vperm.xlu0 %1605, %v404
        %v1607 = vpop.permute.xlu0 %1606
        %1609 = vset.pattern.permute.xlu0 23
        %1610 = vperm.xlu0 %1609, %v405
        %v1611 = vpop.permute.xlu0 %1610
        %v1613 = vmul.f32 %v701, %v1599
        %v1614 = vmul.f32 %v702, %v1599
        %v1615 = vmul.f32 %v703, %v1603
        %v1616 = vmul.f32 %v704, %v1603
        %v1617 = vmul.f32 %v705, %v1607
        %v1618 = vmul.f32 %v706, %v1607
        %v1619 = vmul.f32 %v707, %v1611
        %v1620 = vmul.f32 %v708, %v1611
        %v1621 = vadd.f32 %v1589, %v1613
        %v1622 = vadd.f32 %v1590, %v1614
        %v1623 = vadd.f32 %v1591, %v1615
        %v1624 = vadd.f32 %v1592, %v1616
        %v1625 = vadd.f32 %v1593, %v1617
        %v1626 = vadd.f32 %v1594, %v1618
        %v1627 = vadd.f32 %v1595, %v1619
        %v1628 = vadd.f32 %v1596, %v1620
        %1629 = vset.pattern.permute.xlu0 24
        %1630 = vperm.xlu0 %1629, %v402
        %v1631 = vpop.permute.xlu0 %1630
        %1633 = vset.pattern.permute.xlu0 24
        %1634 = vperm.xlu0 %1633, %v403
        %v1635 = vpop.permute.xlu0 %1634
        %1637 = vset.pattern.permute.xlu0 24
        %1638 = vperm.xlu0 %1637, %v404
        %v1639 = vpop.permute.xlu0 %1638
        %1641 = vset.pattern.permute.xlu0 24
        %1642 = vperm.xlu0 %1641, %v405
        %v1643 = vpop.permute.xlu0 %1642
        %v1645 = vmul.f32 %v742, %v1631
        %v1646 = vmul.f32 %v743, %v1631
        %v1647 = vmul.f32 %v744, %v1635
        %v1648 = vmul.f32 %v745, %v1635
        %v1649 = vmul.f32 %v746, %v1639
        %v1650 = vmul.f32 %v747, %v1639
        %v1651 = vmul.f32 %v748, %v1643
        %v1652 = vmul.f32 %v749, %v1643
        %v1653 = vadd.f32 %v1621, %v1645
        %v1654 = vadd.f32 %v1622, %v1646
        %v1655 = vadd.f32 %v1623, %v1647
        %v1656 = vadd.f32 %v1624, %v1648
        %v1657 = vadd.f32 %v1625, %v1649
        %v1658 = vadd.f32 %v1626, %v1650
        %v1659 = vadd.f32 %v1627, %v1651
        %v1660 = vadd.f32 %v1628, %v1652
        %1661 = vrot.lane.b32.xlu0 %v1653, 96
        %v1662 = vpop.permute.xlu0 %1661
        %1663 = vrot.lane.b32.xlu0 %v1655, 96
        %v1664 = vpop.permute.xlu0 %1663
        %1665 = vrot.lane.b32.xlu0 %v1657, 96
        %v1666 = vpop.permute.xlu0 %1665
        %1667 = vrot.lane.b32.xlu0 %v1659, 96
        %v1668 = vpop.permute.xlu0 %1667
        %1669 = vrot.lane.b32.xlu0 %v1654, 96
        %v1670 = vpop.permute.xlu0 %1669
        %1671 = vrot.lane.b32.xlu0 %v1656, 96
        %v1672 = vpop.permute.xlu0 %1671
        %1673 = vrot.lane.b32.xlu0 %v1658, 96
        %v1674 = vpop.permute.xlu0 %1673
        %1675 = vrot.lane.b32.xlu0 %v1660, 96
        %v1676 = vpop.permute.xlu0 %1675
        %vm1677 = vcmp.lt.s32.totalorder %v601, 96
        %v1678 = vsel %vm1677, %v1662, %v1670
        %v1679 = vsel %vm1677, %v1664, %v1672
        %v1680 = vsel %vm1677, %v1666, %v1674
        %v1681 = vsel %vm1677, %v1668, %v1676
        %v1682 = vsel %vm1677, %v1670, %v1662
        %v1683 = vsel %vm1677, %v1672, %v1664
        %v1684 = vsel %vm1677, %v1674, %v1666
        %v1685 = vsel %vm1677, %v1676, %v1668
        %v1686 = vlaneseq
        %v1687 = vshrl.u32 %v1686, 7
        %v1688 = vsub.s32 4, %v1687
        %v1689 = vrot.slane %v406, %v1688
        %v1690 = vlaneseq
        %v1691 = vshrl.u32 %v1690, 7
        %v1692 = vsub.s32 4, %v1691
        %v1693 = vrot.slane %v407, %v1692
        %v1694 = vmul.f32 %v1678, %v1689
        %v1695 = vmul.f32 %v1682, %v1693
        %v1696 = vmul.f32 %v1679, %v1689
        %v1697 = vmul.f32 %v1683, %v1693
        %v1698 = vmul.f32 %v1680, %v1689
        %v1699 = vmul.f32 %v1684, %v1693
        %v1700 = vmul.f32 %v1681, %v1689
        %v1701 = vmul.f32 %v1685, %v1693
        %v1702 = vadd.f32 %v1501, %v1694
        %v1703 = vadd.f32 %v1502, %v1695
        %v1704 = vadd.f32 %v1503, %v1696
        %v1705 = vadd.f32 %v1504, %v1697
        %v1706 = vadd.f32 %v1505, %v1698
        %v1707 = vadd.f32 %v1506, %v1699
        %v1708 = vadd.f32 %v1507, %v1700
        %v1709 = vadd.f32 %v1508, %v1701
        %1711 = vset.pattern.permute.xlu0 0
        %1712 = vperm.xlu0 %1711, %v396
        %v1713 = vpop.permute.xlu0 %1712
        %1716 = vset.pattern.permute.xlu0 0
        %1717 = vperm.xlu0 %1716, %v397
        %v1718 = vpop.permute.xlu0 %1717
        %1721 = vset.pattern.permute.xlu0 0
        %1722 = vperm.xlu0 %1721, %v398
        %v1723 = vpop.permute.xlu0 %1722
        %1726 = vset.pattern.permute.xlu0 0
        %1727 = vperm.xlu0 %1726, %v399
        %v1728 = vpop.permute.xlu0 %1727
        %v1730 = vadd.f32 %v1702, %v1713
        %v1731 = vadd.f32 %v1703, %v1713
        %v1732 = vadd.f32 %v1704, %v1718
        %v1733 = vadd.f32 %v1705, %v1718
        %v1734 = vadd.f32 %v1706, %v1723
        %v1735 = vadd.f32 %v1707, %v1723
        %v1736 = vadd.f32 %v1708, %v1728
        %v1737 = vadd.f32 %v1709, %v1728
        %1739 = vset.pattern.permute.xlu0 0
        %1740 = vperm.xlu0 %1739, %v401
        %v1741 = vpop.permute.xlu0 %1740
        %vm1743 = vcmask 261120
        %v1745 = vsel %vm1743, %v400, 0
        %1747 = vmatprep.subr.mxu0 0.0
        %1748 = vmatpush1.msra.mxu0 0.0
        %1749 = vmatprep.subr.mxu0 0.0
        %1750 = vmatpush1.msra.mxu0 0.0
        %1751 = vmatprep.subr.mxu0 0.0
        %1752 = vmatpush1.msra.mxu0 0.0
        %1753 = vmatprep.subr.mxu0 0.0
        %1754 = vmatpush1.msra.mxu0 0.0
        %1755 = vmatprep.subr.mxu0 0.0
        %1756 = vmatpush1.msra.mxu0 0.0
        %1757 = vmatprep.subr.mxu0 0.0
        %1758 = vmatpush1.msra.mxu0 0.0
        %1759 = vmatprep.subr.mxu0 0.0
        %1760 = vmatpush1.msra.mxu0 0.0
        %1761 = vmatprep.subr.mxu0 0.0
        %1762 = vmatpush1.msra.mxu0 0.0
        %1763 = vmatprep.subr.mxu0 0.0
        %1764 = vmatpush1.msra.mxu0 0.0
        %1765 = vmatprep.subr.mxu0 0.0
        %1766 = vmatpush1.msra.mxu0 0.0
        %1767 = vmatprep.subr.mxu0 0.0
        %1768 = vmatpush1.msra.mxu0 0.0
        %1769 = vmatprep.subr.mxu0 0.0
        %1770 = vmatpush1.msra.mxu0 0.0
        %1771 = vmatprep.subr.mxu0 %v1737
        %1772 = vmatpush1.msra.mxu0 %v1736
        %1773 = vmatprep.subr.mxu0 %v1735
        %1774 = vmatpush1.msra.mxu0 %v1734
        %1775 = vmatprep.subr.mxu0 %v1733
        %1776 = vmatpush1.msra.mxu0 %v1732
        %1777 = vmatprep.subr.mxu0 %v1731
        %1778 = vmatpush1.msra.mxu0 %v1730
        %1779 = vmatprep.subr.mxu0 0.0
        %1780 = vmatpush2.msra.mxu0 0.0
        %1781 = vmatprep.subr.mxu0 0.0
        %1782 = vmatpush2.msra.mxu0 0.0
        %1783 = vmatprep.subr.mxu0 0.0
        %1784 = vmatpush2.msra.mxu0 0.0
        %1785 = vmatprep.subr.mxu0 0.0
        %1786 = vmatpush2.msra.mxu0 0.0
        %1787 = vmatprep.subr.mxu0 0.0
        %1788 = vmatpush2.msra.mxu0 0.0
        %1789 = vmatprep.subr.mxu0 0.0
        %1790 = vmatpush2.msra.mxu0 0.0
        %1791 = vmatprep.subr.mxu0 0.0
        %1792 = vmatpush2.msra.mxu0 0.0
        %1793 = vmatprep.subr.mxu0 0.0
        %1794 = vmatpush2.msra.mxu0 0.0
        %1795 = vmatprep.subr.mxu0 0.0
        %1796 = vmatpush2.msra.mxu0 0.0
        %1797 = vmatprep.subr.mxu0 0.0
        %1798 = vmatpush2.msra.mxu0 0.0
        %1799 = vmatprep.subr.mxu0 0.0
        %1800 = vmatpush2.msra.mxu0 0.0
        %1801 = vmatprep.subr.mxu0 0.0
        %1802 = vmatpush2.msra.mxu0 0.0
        %1803 = vmatprep.subr.mxu0 0.0
        %1804 = vmatpush2.msra.mxu0 0.0
        %1805 = vmatprep.subr.mxu0 0.0
        %1806 = vmatpush2.msra.mxu0 0.0
        %1807 = vmatprep.subr.mxu0 0.0
        %1808 = vmatpush2.msra.mxu0 0.0
        %1809 = vmatprep.subr.mxu0 0.0
        %1810 = vmatpush2.msra.mxu0 0.0
        %1811 = vmatprep.mubr.f32.mxu0 0.0
        %1812 = vmatmul.mubr.f32.gmra.mxu0 %v1745
        %v1813 = vpop.f32.mrf.mxu0
        %v1814 = vadd.f32 %v1741, %v1813
        %v1815 = vpop.f32.mrf.mxu0
        %v1816 = vadd.f32 %v1741, %v1815
        %1817 = vdwg.mxu0
        %1818 = vst [vmem:[%s366] sm:$0xff] %v1730
        %1819 = vst [vmem:[%s366 + $0x8] sm:$0xff] %v1731
        %1820 = vst [vmem:[%s366 + $0x10] sm:$0xff] %v1732
        %1821 = vst [vmem:[%s366 + $0x18] sm:$0xff] %v1733
        %1822 = vst [vmem:[%s366 + $0x20] sm:$0xff] %v1734
        %1823 = vst [vmem:[%s366 + $0x28] sm:$0xff] %v1735
        %1824 = vst [vmem:[%s366 + $0x30] sm:$0xff] %v1736
        %1825 = vst [vmem:[%s366 + $0x38] sm:$0xff] %v1737
        %v1828 = vcombine.low %v1814, %v1816
        %1830 = vst [vmem:[%s387] sm:$0x77] %v1828
        %s1831 = sand.u32 %s232, 1
        %s1832 = scalar_lea.sflag [#allocation3], %s1831
        %s1833 = sand.u32 %s232, 1
        %s1834 = smul.addr %s1833, 64
        %s1835 = scalar_lea.vmem [#allocation2], %s1834
        %p1836 = scmp.lt.s32.totalorder %s25, 1
        %s1837 = scalar_select %p1836, %s25, 1
        %s1838 = smul.addr %s1837, 2
        %s1839 = smul.addr %s1838, 4
        %s1840 = scalar_lea.vmem %s10, %s1839
        // Predicated region
        $region57: #{tpu_custom_call.1} parent=55 // pred_check
          %p1841 = pneg %p242
        $region58: #{tpu_custom_call.1} parent=55 // pred_check_branch
          %1843 = sbr.rel (%p1841) target = $region60
        $region59: #{tpu_custom_call.1} parent=55 // pred_region
          %s1845 = ssub.s32 1024, 1024
          %1846 = vsyncadd %s1832, %s1845
          %s1847 = smul.addr %s25, 8
          %s1848 = smul.addr %s1847, 128
          %s1849 = scalar_lea.hbm %s9, %s1848
          %s1850 = sshll.u32 %s1835, 4
          %s1851 = int_to_ptr.vmem [resolvable:$true] %s1850
          %1856 = dma.vmem_to_hbm [thread:$0]  %s1851, 1024, %s1849, %s1832, 256, 256, 16
        $region60: #{tpu_custom_call.1} parent=55 // pred_fallthru
          _
        // Predicated region
        $region61: #{tpu_custom_call.1} parent=55 // pred_check
          %p1857 = pneg %p268
        $region62: #{tpu_custom_call.1} parent=55 // pred_check_branch
          %1859 = sbr.rel (%p1857) target = $region64
        $region63: #{tpu_custom_call.1} parent=55 // pred_region
          _
        $region64: #{tpu_custom_call.1} parent=55 // pred_fallthru
          _
      $region56: #{tpu_custom_call.1} parent=5 // pred_fallthru
        _
      %p1860 = scmp.le.s32.totalorder 2, %s20
      // Predicated region
      $region65: #{tpu_custom_call.1} parent=5 // pred_check
        %p1861 = pneg %p1860
      $region66: #{tpu_custom_call.1} parent=5 // pred_check_branch
        %1863 = sbr.rel (%p1861) target = $region68
      $region67: #{tpu_custom_call.1} parent=5 // pred_region
        %s1864 = ssub.s32 %s20, 2
        // Predicated region
        $region69: #{tpu_custom_call.1} parent=67 // pred_check
          %p1865 = pneg %p248
        $region70: #{tpu_custom_call.1} parent=67 // pred_check_branch
          %1867 = sbr.rel (%p1865) target = $region72
        $region71: #{tpu_custom_call.1} parent=67 // pred_region
          %s1868 = sand.u32 %s233, 1
          %s1869 = scalar_lea.sflag [#allocation3], %s1868
          %s1870 = sand.u32 %s233, 1
          %s1871 = smul.addr %s1870, 64
          %s1872 = scalar_lea.vmem [#allocation2], %s1871
          %1873 = dma.done %s1869, 1024
        $region72: #{tpu_custom_call.1} parent=67 // pred_fallthru
          _
        // Predicated region
        $region73: #{tpu_custom_call.1} parent=67 // pred_check
          %p1874 = pneg %p274
        $region74: #{tpu_custom_call.1} parent=67 // pred_check_branch
          %1876 = sbr.rel (%p1874) target = $region76
        $region75: #{tpu_custom_call.1} parent=67 // pred_region
          %p1877 = scmp.lt.s32.totalorder %s26, 1
          %s1878 = scalar_select %p1877, %s26, 1
          %s1879 = smul.addr %s1878, 2
          %s1880 = smul.addr %s1879, 4
          %s1881 = scalar_lea.vmem %s10, %s1880
        $region76: #{tpu_custom_call.1} parent=67 // pred_fallthru
          _
      $region68: #{tpu_custom_call.1} parent=5 // pred_fallthru
        _
    $region6: #{tpu_custom_call.1} parent=1 // loop_footer
      %s24 = sadd.s32 1, %s20
    $region7: #{tpu_custom_call.1} parent=1 // loop_footer_branch
      %19 = sbr.rel target = $region3
    $region8: #{tpu_custom_call.1} parent=1 // loop_exit
      _
    %1882 = vsyncpa [#allocation3], 1
    %s1883 = scalar_lea.sflag [#allocation3], 1
    %1884 = vsyncpa %s1883, 1

</llo_original>
